<compile_context>
chip_gen: v5e
topology: v5e:2x2
jax: 0.10.0
libtpu: 0.0.40
codegen_flags: <defaults>
</compile_context>

<pallas_src>
import math

import numpy as np
import jax
import jax.numpy as jnp
from jax import lax
from jax.experimental import pallas as pl
from jax.experimental.pallas import tpu as pltpu  # noqa: F401  (TPU backend)

INPUT_DIM = 16
HIDDEN_DIM = 32            # hidden_dim
NUM_HEADS = 2              # num_heads
NUM_LAYERS = 2             # num_layers
FFN_DIM = HIDDEN_DIM * 2   # dim_feedforward
HEAD_DIM = HIDDEN_DIM // NUM_HEADS
LN_EPS = 1e-5
SEQ = 8
BATCH = 2
SLAB_W = 128               # lane width of the packed weight slab


# ---------------------------------------------------------------------------
# Static slab layout: every tensor starts on an 8-row (sublane) boundary.
# ---------------------------------------------------------------------------
def _build_layout():
    layout = {}
    r = 0

    def add(name, rows, cols):
        nonlocal r
        layout[name] = (r, rows, cols)
        r += ((rows + 7) // 8) * 8

    add("emb_w", INPUT_DIM, HIDDEN_DIM)       # (16, 32)
    add("emb_b", 1, HIDDEN_DIM)               # (1, 32)
    add("fc_w", 1, HIDDEN_DIM)                # (1, 32)  row vector
    add("fc_b", 1, 1)                         # (1, 1)
    for l in range(NUM_LAYERS):
        add(f"wqkv{l}", HIDDEN_DIM, 3 * HIDDEN_DIM)   # (32, 96) fused QKV
        add(f"bqkv{l}", 1, 3 * HIDDEN_DIM)            # (1, 96)
        add(f"wo{l}", HIDDEN_DIM, HIDDEN_DIM)         # (32, 32) sliced per head
        add(f"bo{l}", 1, HIDDEN_DIM)
        add(f"ln1_g{l}", 1, HIDDEN_DIM)
        add(f"ln1_b{l}", 1, HIDDEN_DIM)
        add(f"w1{l}", HIDDEN_DIM, FFN_DIM)            # (32, 64)
        add(f"b1{l}", 1, FFN_DIM)
        add(f"w2{l}", FFN_DIM, HIDDEN_DIM)            # (64, 32)
        add(f"b2{l}", 1, HIDDEN_DIM)
        add(f"ln2_g{l}", 1, HIDDEN_DIM)
        add(f"ln2_b{l}", 1, HIDDEN_DIM)
    return layout, r


_LAYOUT, _SLAB_ROWS = _build_layout()


def _layernorm(x, g, b):
    mean = jnp.mean(x, axis=-1, keepdims=True)
    var = jnp.mean((x - mean) ** 2, axis=-1, keepdims=True)
    return (x - mean) * lax.rsqrt(var + LN_EPS) * g + b


# ---------------------------------------------------------------------------
# Fused forward kernel (no grid; everything resident in VMEM).
# ---------------------------------------------------------------------------
def _forward_kernel(x_ref, w_ref, o_ref):
    """x_ref: (B*S, input_dim) batch-major rows; w_ref: packed weight slab;
    o_ref: (B*S, 1)."""

    def ld(name):
        r0, rows, cols = _LAYOUT[name]
        return w_ref[r0:r0 + rows, :cols]          # static, 8-row-aligned slice

    x = x_ref[...]                                  # (B*S, input_dim)

    # Embedding: Linear(input_dim -> hidden_dim)
    h = jnp.dot(x, ld("emb_w"), preferred_element_type=jnp.float32) + ld("emb_b")

    scale = 1.0 / math.sqrt(HEAD_DIM)
    for l in range(NUM_LAYERS):
        # --- self attention: fused QKV projection (one matmul) -------------
        qkv = (jnp.dot(h, ld(f"wqkv{l}"), preferred_element_type=jnp.float32)
               + ld(f"bqkv{l}"))                    # (B*S, 3*D)

        wo_r0, _, _ = _LAYOUT[f"wo{l}"]
        attn = None
        for hh in range(NUM_HEADS):
            qc = hh * HEAD_DIM
            kc = HIDDEN_DIM + hh * HEAD_DIM
            vc = 2 * HIDDEN_DIM + hh * HEAD_DIM
            pv_rows = []
            for b in range(BATCH):
                r0, r1 = b * SEQ, (b + 1) * SEQ
                qh = qkv[r0:r1, qc:qc + HEAD_DIM]
                kh = qkv[r0:r1, kc:kc + HEAD_DIM]
                vh = qkv[r0:r1, vc:vc + HEAD_DIM]
                # scores = qh @ kh^T without an explicit transpose
                s = lax.dot_general(qh, kh, (((1,), (1,)), ((), ())),
                                    preferred_element_type=jnp.float32) * scale
                s = s - jnp.max(s, axis=-1, keepdims=True)
                e = jnp.exp(s)
                pr = e / jnp.sum(e, axis=-1, keepdims=True)   # exact softmax
                pv_rows.append(jnp.dot(pr, vh,
                                       preferred_element_type=jnp.float32))
            # row-aligned (8-row boundary) concat across batches -> (B*S, HEAD_DIM)
            pv_h = jnp.concatenate(pv_rows, axis=0)
            # per-head slice of wo (sublane offset = multiple of 8)
            wo_h = w_ref[wo_r0 + hh * HEAD_DIM: wo_r0 + (hh + 1) * HEAD_DIM,
                         :HIDDEN_DIM]
            contrib = jnp.dot(pv_h, wo_h, preferred_element_type=jnp.float32)
            attn = contrib if attn is None else attn + contrib
        attn = attn + ld(f"bo{l}")

        # --- residual + LayerNorm 1 ----------------------------------------
        h = _layernorm(h + attn, ld(f"ln1_g{l}"), ld(f"ln1_b{l}"))

        # --- feed-forward (ReLU) --------------------------------------------
        f = jnp.maximum(
            jnp.dot(h, ld(f"w1{l}"), preferred_element_type=jnp.float32)
            + ld(f"b1{l}"), 0.0)
        f = jnp.dot(f, ld(f"w2{l}"), preferred_element_type=jnp.float32) + ld(f"b2{l}")

        # --- residual + LayerNorm 2 ------------------------------------------
        h = _layernorm(h + f, ld(f"ln2_g{l}"), ld(f"ln2_b{l}"))

    # fc: Linear(hidden_dim -> 1) as multiply + lane reduction -> (B*S, 1)
    out = jnp.sum(h * ld("fc_w"), axis=-1, keepdims=True) + ld("fc_b")
    o_ref[...] = out                                # one contiguous store


def simple_transformer_forward(x, weight_slab):
    """x: (S, B, input_dim) seq-major (PyTorch batch_first=False). Returns (S, B)."""
    S, B, _ = x.shape
    # tiny layout permute of the input only, folded into the XLA prologue
    x_rows = jnp.transpose(x, (1, 0, 2)).reshape(B * S, INPUT_DIM)
    out = pl.pallas_call(
        _forward_kernel,
        out_shape=jax.ShapeDtypeStruct((B * S, 1), jnp.float32),
    )(x_rows, weight_slab)
    # (B*S, 1) batch-major rows -> (S, B), trivial XLA epilogue
    return out.reshape(B, S).T


# ---------------------------------------------------------------------------
# Deterministic parameter init (PyTorch-style uniform fan-in bounds).
# Matmul weights are stored pre-transposed as (in, out); QKV is pre-fused.
# ---------------------------------------------------------------------------
def init_params(key):
    def lin(k, in_dim, out_dim):
        kw, kb = jax.random.split(k)
        bound = 1.0 / math.sqrt(in_dim)
        w = jax.random.uniform(kw, (in_dim, out_dim), jnp.float32, -bound, bound)
        b = jax.random.uniform(kb, (1, out_dim), jnp.float32, -bound, bound)
        return w, b

    keys = jax.random.split(key, 2 + NUM_LAYERS)
    p = {}
    p["emb_w"], p["emb_b"] = lin(keys[0], INPUT_DIM, HIDDEN_DIM)
    fc_w, fc_b = lin(keys[1], HIDDEN_DIM, 1)
    p["fc_w"] = fc_w.T                               # (1, 32) row for reduce-fc
    p["fc_b"] = fc_b                                 # (1, 1)
    for l in range(NUM_LAYERS):
        ks = jax.random.split(keys[2 + l], 6)
        wq, bq = lin(ks[0], HIDDEN_DIM, HIDDEN_DIM)
        wk, bk = lin(ks[1], HIDDEN_DIM, HIDDEN_DIM)
        wv, bv = lin(ks[2], HIDDEN_DIM, HIDDEN_DIM)
        wo, bo = lin(ks[3], HIDDEN_DIM, HIDDEN_DIM)
        w1, b1 = lin(ks[4], HIDDEN_DIM, FFN_DIM)
        w2, b2 = lin(ks[5], FFN_DIM, HIDDEN_DIM)
        p[f"wqkv{l}"] = jnp.concatenate([wq, wk, wv], axis=1)   # (32, 96)
        p[f"bqkv{l}"] = jnp.concatenate([bq, bk, bv], axis=1)   # (1, 96)
        p[f"wo{l}"], p[f"bo{l}"] = wo, bo
        p[f"ln1_g{l}"] = jnp.ones((1, HIDDEN_DIM), jnp.float32)
        p[f"ln1_b{l}"] = jnp.zeros((1, HIDDEN_DIM), jnp.float32)
        p[f"w1{l}"], p[f"b1{l}"] = w1, b1
        p[f"w2{l}"], p[f"b2{l}"] = w2, b2
        p[f"ln2_g{l}"] = jnp.ones((1, HIDDEN_DIM), jnp.float32)
        p[f"ln2_b{l}"] = jnp.zeros((1, HIDDEN_DIM), jnp.float32)
    return p


def pack_params(p):
    """Pack all tensors into one (SLAB_ROWS, 128) f32 slab (host side)."""
    slab = np.zeros((_SLAB_ROWS, SLAB_W), np.float32)
    for name, (r0, rows, cols) in _LAYOUT.items():
        arr = np.asarray(p[name], np.float32)
        assert arr.shape == (rows, cols), (name, arr.shape, (rows, cols))
        slab[r0:r0 + rows, :cols] = arr
    return jnp.asarray(slab)


# ---------------------------------------------------------------------------
# Pure-JAX reference (same math, unfused) for a correctness check.
# ---------------------------------------------------------------------------
def reference_forward(x, p):
    hi = jax.lax.Precision.HIGHEST
    S, B, _ = x.shape
    h = jnp.einsum("sbi,ij->sbj", x, p["emb_w"], precision=hi) + p["emb_b"]
    scale = 1.0 / math.sqrt(HEAD_DIM)
    for l in range(NUM_LAYERS):
        qkv = jnp.einsum("sbd,de->sbe", h, p[f"wqkv{l}"], precision=hi) + p[f"bqkv{l}"]
        q = qkv[..., :HIDDEN_DIM].reshape(S, B, NUM_HEADS, HEAD_DIM)
        k = qkv[..., HIDDEN_DIM:2 * HIDDEN_DIM].reshape(S, B, NUM_HEADS, HEAD_DIM)
        v = qkv[..., 2 * HIDDEN_DIM:].reshape(S, B, NUM_HEADS, HEAD_DIM)
        s = jnp.einsum("qbhd,kbhd->bhqk", q, k, precision=hi) * scale
        pr = jax.nn.softmax(s, axis=-1)
        ctx = jnp.einsum("bhqk,kbhd->qbhd", pr, v, precision=hi).reshape(S, B, HIDDEN_DIM)
        attn = jnp.einsum("sbd,de->sbe", ctx, p[f"wo{l}"], precision=hi) + p[f"bo{l}"]
        h = _layernorm(h + attn, p[f"ln1_g{l}"], p[f"ln1_b{l}"])
        f = jax.nn.relu(jnp.einsum("sbd,df->sbf", h, p[f"w1{l}"], precision=hi) + p[f"b1{l}"])
        f = jnp.einsum("sbf,fd->sbd", f, p[f"w2{l}"], precision=hi) + p[f"b2{l}"]
        h = _layernorm(h + f, p[f"ln2_g{l}"], p[f"ln2_b{l}"])
    return jnp.einsum("sbd,d->sb", h, p["fc_w"][0], precision=hi) + p["fc_b"][0, 0]


if __name__ == "__main__":
    root = jax.random.PRNGKey(0)
    kx, kp = jax.random.split(root)
    x = jax.random.normal(kx, (SEQ, BATCH, INPUT_DIM), jnp.float32)
    params = init_params(kp)
    slab = pack_params(params)

    out = jax.jit(simple_transformer_forward)(x, slab)
    jax.block_until_ready(out)
    assert out.shape == (SEQ, BATCH), out.shape

    ref = reference_forward(x, params)
    np.testing.assert_allclose(np.asarray(out), np.asarray(ref),
                               atol=5e-3, rtol=5e-3)
    print("KERNEL_OK")
</pallas_src>

<mosaic_0001>
module attributes {stable_mosaic.version = 11 : i64} {
  func.func @_forward_kernel(%arg0: memref<16x16xf32, #tpu.memory_space<vmem>>, %arg1: memref<488x128xf32, #tpu.memory_space<vmem>>, %arg2: memref<16x1xf32, #tpu.memory_space<vmem>>) attributes {dimension_semantics = [], scalar_prefetch = 0 : i64, scratch_operands = 0 : i64, tpu.core_type = #tpu.core_type<tc>} {
    %c0 = arith.constant 0 : index
    %c0_0 = arith.constant 0 : index
    %0 = vector.load %arg0[%c0, %c0_0] : memref<16x16xf32, #tpu.memory_space<vmem>>, vector<16x16xf32>
    %c0_1 = arith.constant 0 : index
    %c0_2 = arith.constant 0 : index
    %1 = vector.load %arg1[%c0_1, %c0_2] : memref<488x128xf32, #tpu.memory_space<vmem>>, vector<16x32xf32>
    %cst = arith.constant dense<0.000000e+00> : vector<16x32xf32>
    %2 = tpu.matmul %0, %1, %cst {dimension_numbers = #tpu.dot_dimension_numbers<[1], [0], [0], [1], [0, 0, 1, 1], [], []>} : vector<16x16xf32>, vector<16x32xf32>, vector<16x32xf32> -> vector<16x32xf32>
    %c16 = arith.constant 16 : index
    %c0_3 = arith.constant 0 : index
    %3 = vector.load %arg1[%c16, %c0_3] : memref<488x128xf32, #tpu.memory_space<vmem>>, vector<1x32xf32>
    %4 = vector.broadcast %3 : vector<1x32xf32> to vector<16x32xf32>
    %5 = arith.addf %2, %4 : vector<16x32xf32>
    %c40 = arith.constant 40 : index
    %c0_4 = arith.constant 0 : index
    %6 = vector.load %arg1[%c40, %c0_4] : memref<488x128xf32, #tpu.memory_space<vmem>>, vector<32x96xf32>
    %cst_5 = arith.constant dense<0.000000e+00> : vector<16x96xf32>
    %7 = tpu.matmul %5, %6, %cst_5 {dimension_numbers = #tpu.dot_dimension_numbers<[1], [0], [0], [1], [0, 0, 1, 1], [], []>} : vector<16x32xf32>, vector<32x96xf32>, vector<16x96xf32> -> vector<16x96xf32>
    %c72 = arith.constant 72 : index
    %c0_6 = arith.constant 0 : index
    %8 = vector.load %arg1[%c72, %c0_6] : memref<488x128xf32, #tpu.memory_space<vmem>>, vector<1x96xf32>
    %9 = vector.broadcast %8 : vector<1x96xf32> to vector<16x96xf32>
    %10 = arith.addf %7, %9 : vector<16x96xf32>
    %11 = vector.extract_strided_slice %10 {offsets = [0, 0], sizes = [8, 16], strides = [1, 1]} : vector<16x96xf32> to vector<8x16xf32>
    %12 = vector.extract_strided_slice %10 {offsets = [0, 32], sizes = [8, 16], strides = [1, 1]} : vector<16x96xf32> to vector<8x16xf32>
    %13 = vector.extract_strided_slice %10 {offsets = [0, 64], sizes = [8, 16], strides = [1, 1]} : vector<16x96xf32> to vector<8x16xf32>
    %cst_7 = arith.constant dense<0.000000e+00> : vector<8x8xf32>
    %14 = tpu.matmul %11, %12, %cst_7 {dimension_numbers = #tpu.dot_dimension_numbers<[1], [1], [0], [0], [0, 0, 1, 0], [], []>} : vector<8x16xf32>, vector<8x16xf32>, vector<8x8xf32> -> vector<8x8xf32>
    %cst_8 = arith.constant 2.500000e-01 : f32
    %15 = vector.broadcast %cst_8 : f32 to vector<8x8xf32>
    %16 = arith.mulf %14, %15 : vector<8x8xf32>
    %cst_9 = arith.constant dense<0xFF800000> : vector<8xf32>
    %17 = vector.multi_reduction <maximumf>, %16, %cst_9 [1] : vector<8x8xf32> to vector<8xf32>
    %18 = vector.shape_cast %17 : vector<8xf32> to vector<8x1xf32>
    %19 = vector.broadcast %18 : vector<8x1xf32> to vector<8x8xf32>
    %20 = arith.subf %16, %19 : vector<8x8xf32>
    %21 = math.exp %20 : vector<8x8xf32>
    %cst_10 = arith.constant dense<0.000000e+00> : vector<8xf32>
    %22 = vector.multi_reduction <add>, %21, %cst_10 [1] : vector<8x8xf32> to vector<8xf32>
    %23 = vector.shape_cast %22 : vector<8xf32> to vector<8x1xf32>
    %24 = vector.broadcast %23 : vector<8x1xf32> to vector<8x8xf32>
    %25 = arith.divf %21, %24 : vector<8x8xf32>
    %cst_11 = arith.constant dense<0.000000e+00> : vector<8x16xf32>
    %26 = tpu.matmul %25, %13, %cst_11 {dimension_numbers = #tpu.dot_dimension_numbers<[1], [0], [0], [1], [0, 0, 1, 1], [], []>} : vector<8x8xf32>, vector<8x16xf32>, vector<8x16xf32> -> vector<8x16xf32>
    %27 = vector.extract_strided_slice %10 {offsets = [8, 0], sizes = [8, 16], strides = [1, 1]} : vector<16x96xf32> to vector<8x16xf32>
    %28 = vector.extract_strided_slice %10 {offsets = [8, 32], sizes = [8, 16], strides = [1, 1]} : vector<16x96xf32> to vector<8x16xf32>
    %29 = vector.extract_strided_slice %10 {offsets = [8, 64], sizes = [8, 16], strides = [1, 1]} : vector<16x96xf32> to vector<8x16xf32>
    %cst_12 = arith.constant dense<0.000000e+00> : vector<8x8xf32>
    %30 = tpu.matmul %27, %28, %cst_12 {dimension_numbers = #tpu.dot_dimension_numbers<[1], [1], [0], [0], [0, 0, 1, 0], [], []>} : vector<8x16xf32>, vector<8x16xf32>, vector<8x8xf32> -> vector<8x8xf32>
    %cst_13 = arith.constant 2.500000e-01 : f32
    %31 = vector.broadcast %cst_13 : f32 to vector<8x8xf32>
    %32 = arith.mulf %30, %31 : vector<8x8xf32>
    %cst_14 = arith.constant dense<0xFF800000> : vector<8xf32>
    %33 = vector.multi_reduction <maximumf>, %32, %cst_14 [1] : vector<8x8xf32> to vector<8xf32>
    %34 = vector.shape_cast %33 : vector<8xf32> to vector<8x1xf32>
    %35 = vector.broadcast %34 : vector<8x1xf32> to vector<8x8xf32>
    %36 = arith.subf %32, %35 : vector<8x8xf32>
    %37 = math.exp %36 : vector<8x8xf32>
    %cst_15 = arith.constant dense<0.000000e+00> : vector<8xf32>
    %38 = vector.multi_reduction <add>, %37, %cst_15 [1] : vector<8x8xf32> to vector<8xf32>
    %39 = vector.shape_cast %38 : vector<8xf32> to vector<8x1xf32>
    %40 = vector.broadcast %39 : vector<8x1xf32> to vector<8x8xf32>
    %41 = arith.divf %37, %40 : vector<8x8xf32>
    %cst_16 = arith.constant dense<0.000000e+00> : vector<8x16xf32>
    %42 = tpu.matmul %41, %29, %cst_16 {dimension_numbers = #tpu.dot_dimension_numbers<[1], [0], [0], [1], [0, 0, 1, 1], [], []>} : vector<8x8xf32>, vector<8x16xf32>, vector<8x16xf32> -> vector<8x16xf32>
    %43 = tpu.concatenate %26, %42 in 0 : vector<8x16xf32>, vector<8x16xf32> -> vector<16x16xf32>
    %c80 = arith.constant 80 : index
    %c0_17 = arith.constant 0 : index
    %44 = vector.load %arg1[%c80, %c0_17] : memref<488x128xf32, #tpu.memory_space<vmem>>, vector<16x32xf32>
    %cst_18 = arith.constant dense<0.000000e+00> : vector<16x32xf32>
    %45 = tpu.matmul %43, %44, %cst_18 {dimension_numbers = #tpu.dot_dimension_numbers<[1], [0], [0], [1], [0, 0, 1, 1], [], []>} : vector<16x16xf32>, vector<16x32xf32>, vector<16x32xf32> -> vector<16x32xf32>
    %46 = vector.extract_strided_slice %10 {offsets = [0, 16], sizes = [8, 16], strides = [1, 1]} : vector<16x96xf32> to vector<8x16xf32>
    %47 = vector.extract_strided_slice %10 {offsets = [0, 48], sizes = [8, 16], strides = [1, 1]} : vector<16x96xf32> to vector<8x16xf32>
    %48 = vector.extract_strided_slice %10 {offsets = [0, 80], sizes = [8, 16], strides = [1, 1]} : vector<16x96xf32> to vector<8x16xf32>
    %cst_19 = arith.constant dense<0.000000e+00> : vector<8x8xf32>
    %49 = tpu.matmul %46, %47, %cst_19 {dimension_numbers = #tpu.dot_dimension_numbers<[1], [1], [0], [0], [0, 0, 1, 0], [], []>} : vector<8x16xf32>, vector<8x16xf32>, vector<8x8xf32> -> vector<8x8xf32>
    %cst_20 = arith.constant 2.500000e-01 : f32
    %50 = vector.broadcast %cst_20 : f32 to vector<8x8xf32>
    %51 = arith.mulf %49, %50 : vector<8x8xf32>
    %cst_21 = arith.constant dense<0xFF800000> : vector<8xf32>
    %52 = vector.multi_reduction <maximumf>, %51, %cst_21 [1] : vector<8x8xf32> to vector<8xf32>
    %53 = vector.shape_cast %52 : vector<8xf32> to vector<8x1xf32>
    %54 = vector.broadcast %53 : vector<8x1xf32> to vector<8x8xf32>
    %55 = arith.subf %51, %54 : vector<8x8xf32>
    %56 = math.exp %55 : vector<8x8xf32>
    %cst_22 = arith.constant dense<0.000000e+00> : vector<8xf32>
    %57 = vector.multi_reduction <add>, %56, %cst_22 [1] : vector<8x8xf32> to vector<8xf32>
    %58 = vector.shape_cast %57 : vector<8xf32> to vector<8x1xf32>
    %59 = vector.broadcast %58 : vector<8x1xf32> to vector<8x8xf32>
    %60 = arith.divf %56, %59 : vector<8x8xf32>
    %cst_23 = arith.constant dense<0.000000e+00> : vector<8x16xf32>
    %61 = tpu.matmul %60, %48, %cst_23 {dimension_numbers = #tpu.dot_dimension_numbers<[1], [0], [0], [1], [0, 0, 1, 1], [], []>} : vector<8x8xf32>, vector<8x16xf32>, vector<8x16xf32> -> vector<8x16xf32>
    %62 = vector.extract_strided_slice %10 {offsets = [8, 16], sizes = [8, 16], strides = [1, 1]} : vector<16x96xf32> to vector<8x16xf32>
    %63 = vector.extract_strided_slice %10 {offsets = [8, 48], sizes = [8, 16], strides = [1, 1]} : vector<16x96xf32> to vector<8x16xf32>
    %64 = vector.extract_strided_slice %10 {offsets = [8, 80], sizes = [8, 16], strides = [1, 1]} : vector<16x96xf32> to vector<8x16xf32>
    %cst_24 = arith.constant dense<0.000000e+00> : vector<8x8xf32>
    %65 = tpu.matmul %62, %63, %cst_24 {dimension_numbers = #tpu.dot_dimension_numbers<[1], [1], [0], [0], [0, 0, 1, 0], [], []>} : vector<8x16xf32>, vector<8x16xf32>, vector<8x8xf32> -> vector<8x8xf32>
    %cst_25 = arith.constant 2.500000e-01 : f32
    %66 = vector.broadcast %cst_25 : f32 to vector<8x8xf32>
    %67 = arith.mulf %65, %66 : vector<8x8xf32>
    %cst_26 = arith.constant dense<0xFF800000> : vector<8xf32>
    %68 = vector.multi_reduction <maximumf>, %67, %cst_26 [1] : vector<8x8xf32> to vector<8xf32>
    %69 = vector.shape_cast %68 : vector<8xf32> to vector<8x1xf32>
    %70 = vector.broadcast %69 : vector<8x1xf32> to vector<8x8xf32>
    %71 = arith.subf %67, %70 : vector<8x8xf32>
    %72 = math.exp %71 : vector<8x8xf32>
    %cst_27 = arith.constant dense<0.000000e+00> : vector<8xf32>
    %73 = vector.multi_reduction <add>, %72, %cst_27 [1] : vector<8x8xf32> to vector<8xf32>
    %74 = vector.shape_cast %73 : vector<8xf32> to vector<8x1xf32>
    %75 = vector.broadcast %74 : vector<8x1xf32> to vector<8x8xf32>
    %76 = arith.divf %72, %75 : vector<8x8xf32>
    %cst_28 = arith.constant dense<0.000000e+00> : vector<8x16xf32>
    %77 = tpu.matmul %76, %64, %cst_28 {dimension_numbers = #tpu.dot_dimension_numbers<[1], [0], [0], [1], [0, 0, 1, 1], [], []>} : vector<8x8xf32>, vector<8x16xf32>, vector<8x16xf32> -> vector<8x16xf32>
    %78 = tpu.concatenate %61, %77 in 0 : vector<8x16xf32>, vector<8x16xf32> -> vector<16x16xf32>
    %c96 = arith.constant 96 : index
    %c0_29 = arith.constant 0 : index
    %79 = vector.load %arg1[%c96, %c0_29] : memref<488x128xf32, #tpu.memory_space<vmem>>, vector<16x32xf32>
    %cst_30 = arith.constant dense<0.000000e+00> : vector<16x32xf32>
    %80 = tpu.matmul %78, %79, %cst_30 {dimension_numbers = #tpu.dot_dimension_numbers<[1], [0], [0], [1], [0, 0, 1, 1], [], []>} : vector<16x16xf32>, vector<16x32xf32>, vector<16x32xf32> -> vector<16x32xf32>
    %81 = arith.addf %45, %80 : vector<16x32xf32>
    %c112 = arith.constant 112 : index
    %c0_31 = arith.constant 0 : index
    %82 = vector.load %arg1[%c112, %c0_31] : memref<488x128xf32, #tpu.memory_space<vmem>>, vector<1x32xf32>
    %83 = vector.broadcast %82 : vector<1x32xf32> to vector<16x32xf32>
    %84 = arith.addf %81, %83 : vector<16x32xf32>
    %85 = arith.addf %5, %84 : vector<16x32xf32>
    %c120 = arith.constant 120 : index
    %c0_32 = arith.constant 0 : index
    %86 = vector.load %arg1[%c120, %c0_32] : memref<488x128xf32, #tpu.memory_space<vmem>>, vector<1x32xf32>
    %c128 = arith.constant 128 : index
    %c0_33 = arith.constant 0 : index
    %87 = vector.load %arg1[%c128, %c0_33] : memref<488x128xf32, #tpu.memory_space<vmem>>, vector<1x32xf32>
    %cst_34 = arith.constant dense<0.000000e+00> : vector<16xf32>
    %88 = vector.multi_reduction <add>, %85, %cst_34 [1] : vector<16x32xf32> to vector<16xf32>
    %89 = vector.shape_cast %88 : vector<16xf32> to vector<16x1xf32>
    %cst_35 = arith.constant 3.200000e+01 : f32
    %90 = vector.broadcast %cst_35 : f32 to vector<16x1xf32>
    %91 = arith.divf %89, %90 : vector<16x1xf32>
    %92 = vector.broadcast %91 : vector<16x1xf32> to vector<16x32xf32>
    %93 = arith.subf %85, %92 : vector<16x32xf32>
    %94 = arith.mulf %93, %93 : vector<16x32xf32>
    %cst_36 = arith.constant dense<0.000000e+00> : vector<16xf32>
    %95 = vector.multi_reduction <add>, %94, %cst_36 [1] : vector<16x32xf32> to vector<16xf32>
    %96 = vector.shape_cast %95 : vector<16xf32> to vector<16x1xf32>
    %cst_37 = arith.constant 3.200000e+01 : f32
    %97 = vector.broadcast %cst_37 : f32 to vector<16x1xf32>
    %98 = arith.divf %96, %97 : vector<16x1xf32>
    %99 = vector.broadcast %91 : vector<16x1xf32> to vector<16x32xf32>
    %100 = arith.subf %85, %99 : vector<16x32xf32>
    %cst_38 = arith.constant 9.99999974E-6 : f32
    %101 = vector.broadcast %cst_38 : f32 to vector<16x1xf32>
    %102 = arith.addf %98, %101 : vector<16x1xf32>
    %103 = math.rsqrt %102 : vector<16x1xf32>
    %104 = vector.broadcast %103 : vector<16x1xf32> to vector<16x32xf32>
    %105 = arith.mulf %100, %104 : vector<16x32xf32>
    %106 = vector.broadcast %86 : vector<1x32xf32> to vector<16x32xf32>
    %107 = arith.mulf %105, %106 : vector<16x32xf32>
    %108 = vector.broadcast %87 : vector<1x32xf32> to vector<16x32xf32>
    %109 = arith.addf %107, %108 : vector<16x32xf32>
    %c136 = arith.constant 136 : index
    %c0_39 = arith.constant 0 : index
    %110 = vector.load %arg1[%c136, %c0_39] : memref<488x128xf32, #tpu.memory_space<vmem>>, vector<32x64xf32>
    %cst_40 = arith.constant dense<0.000000e+00> : vector<16x64xf32>
    %111 = tpu.matmul %109, %110, %cst_40 {dimension_numbers = #tpu.dot_dimension_numbers<[1], [0], [0], [1], [0, 0, 1, 1], [], []>} : vector<16x32xf32>, vector<32x64xf32>, vector<16x64xf32> -> vector<16x64xf32>
    %c168 = arith.constant 168 : index
    %c0_41 = arith.constant 0 : index
    %112 = vector.load %arg1[%c168, %c0_41] : memref<488x128xf32, #tpu.memory_space<vmem>>, vector<1x64xf32>
    %113 = vector.broadcast %112 : vector<1x64xf32> to vector<16x64xf32>
    %114 = arith.addf %111, %113 : vector<16x64xf32>
    %cst_42 = arith.constant 0.000000e+00 : f32
    %115 = vector.broadcast %cst_42 : f32 to vector<16x64xf32>
    %116 = arith.maximumf %114, %115 : vector<16x64xf32>
    %c176 = arith.constant 176 : index
    %c0_43 = arith.constant 0 : index
    %117 = vector.load %arg1[%c176, %c0_43] : memref<488x128xf32, #tpu.memory_space<vmem>>, vector<64x32xf32>
    %cst_44 = arith.constant dense<0.000000e+00> : vector<16x32xf32>
    %118 = tpu.matmul %116, %117, %cst_44 {dimension_numbers = #tpu.dot_dimension_numbers<[1], [0], [0], [1], [0, 0, 1, 1], [], []>} : vector<16x64xf32>, vector<64x32xf32>, vector<16x32xf32> -> vector<16x32xf32>
    %c240 = arith.constant 240 : index
    %c0_45 = arith.constant 0 : index
    %119 = vector.load %arg1[%c240, %c0_45] : memref<488x128xf32, #tpu.memory_space<vmem>>, vector<1x32xf32>
    %120 = vector.broadcast %119 : vector<1x32xf32> to vector<16x32xf32>
    %121 = arith.addf %118, %120 : vector<16x32xf32>
    %122 = arith.addf %109, %121 : vector<16x32xf32>
    %c248 = arith.constant 248 : index
    %c0_46 = arith.constant 0 : index
    %123 = vector.load %arg1[%c248, %c0_46] : memref<488x128xf32, #tpu.memory_space<vmem>>, vector<1x32xf32>
    %c256 = arith.constant 256 : index
    %c0_47 = arith.constant 0 : index
    %124 = vector.load %arg1[%c256, %c0_47] : memref<488x128xf32, #tpu.memory_space<vmem>>, vector<1x32xf32>
    %cst_48 = arith.constant dense<0.000000e+00> : vector<16xf32>
    %125 = vector.multi_reduction <add>, %122, %cst_48 [1] : vector<16x32xf32> to vector<16xf32>
    %126 = vector.shape_cast %125 : vector<16xf32> to vector<16x1xf32>
    %cst_49 = arith.constant 3.200000e+01 : f32
    %127 = vector.broadcast %cst_49 : f32 to vector<16x1xf32>
    %128 = arith.divf %126, %127 : vector<16x1xf32>
    %129 = vector.broadcast %128 : vector<16x1xf32> to vector<16x32xf32>
    %130 = arith.subf %122, %129 : vector<16x32xf32>
    %131 = arith.mulf %130, %130 : vector<16x32xf32>
    %cst_50 = arith.constant dense<0.000000e+00> : vector<16xf32>
    %132 = vector.multi_reduction <add>, %131, %cst_50 [1] : vector<16x32xf32> to vector<16xf32>
    %133 = vector.shape_cast %132 : vector<16xf32> to vector<16x1xf32>
    %cst_51 = arith.constant 3.200000e+01 : f32
    %134 = vector.broadcast %cst_51 : f32 to vector<16x1xf32>
    %135 = arith.divf %133, %134 : vector<16x1xf32>
    %136 = vector.broadcast %128 : vector<16x1xf32> to vector<16x32xf32>
    %137 = arith.subf %122, %136 : vector<16x32xf32>
    %cst_52 = arith.constant 9.99999974E-6 : f32
    %138 = vector.broadcast %cst_52 : f32 to vector<16x1xf32>
    %139 = arith.addf %135, %138 : vector<16x1xf32>
    %140 = math.rsqrt %139 : vector<16x1xf32>
    %141 = vector.broadcast %140 : vector<16x1xf32> to vector<16x32xf32>
    %142 = arith.mulf %137, %141 : vector<16x32xf32>
    %143 = vector.broadcast %123 : vector<1x32xf32> to vector<16x32xf32>
    %144 = arith.mulf %142, %143 : vector<16x32xf32>
    %145 = vector.broadcast %124 : vector<1x32xf32> to vector<16x32xf32>
    %146 = arith.addf %144, %145 : vector<16x32xf32>
    %c264 = arith.constant 264 : index
    %c0_53 = arith.constant 0 : index
    %147 = vector.load %arg1[%c264, %c0_53] : memref<488x128xf32, #tpu.memory_space<vmem>>, vector<32x96xf32>
    %cst_54 = arith.constant dense<0.000000e+00> : vector<16x96xf32>
    %148 = tpu.matmul %146, %147, %cst_54 {dimension_numbers = #tpu.dot_dimension_numbers<[1], [0], [0], [1], [0, 0, 1, 1], [], []>} : vector<16x32xf32>, vector<32x96xf32>, vector<16x96xf32> -> vector<16x96xf32>
    %c296 = arith.constant 296 : index
    %c0_55 = arith.constant 0 : index
    %149 = vector.load %arg1[%c296, %c0_55] : memref<488x128xf32, #tpu.memory_space<vmem>>, vector<1x96xf32>
    %150 = vector.broadcast %149 : vector<1x96xf32> to vector<16x96xf32>
    %151 = arith.addf %148, %150 : vector<16x96xf32>
    %152 = vector.extract_strided_slice %151 {offsets = [0, 0], sizes = [8, 16], strides = [1, 1]} : vector<16x96xf32> to vector<8x16xf32>
    %153 = vector.extract_strided_slice %151 {offsets = [0, 32], sizes = [8, 16], strides = [1, 1]} : vector<16x96xf32> to vector<8x16xf32>
    %154 = vector.extract_strided_slice %151 {offsets = [0, 64], sizes = [8, 16], strides = [1, 1]} : vector<16x96xf32> to vector<8x16xf32>
    %cst_56 = arith.constant dense<0.000000e+00> : vector<8x8xf32>
    %155 = tpu.matmul %152, %153, %cst_56 {dimension_numbers = #tpu.dot_dimension_numbers<[1], [1], [0], [0], [0, 0, 1, 0], [], []>} : vector<8x16xf32>, vector<8x16xf32>, vector<8x8xf32> -> vector<8x8xf32>
    %cst_57 = arith.constant 2.500000e-01 : f32
    %156 = vector.broadcast %cst_57 : f32 to vector<8x8xf32>
    %157 = arith.mulf %155, %156 : vector<8x8xf32>
    %cst_58 = arith.constant dense<0xFF800000> : vector<8xf32>
    %158 = vector.multi_reduction <maximumf>, %157, %cst_58 [1] : vector<8x8xf32> to vector<8xf32>
    %159 = vector.shape_cast %158 : vector<8xf32> to vector<8x1xf32>
    %160 = vector.broadcast %159 : vector<8x1xf32> to vector<8x8xf32>
    %161 = arith.subf %157, %160 : vector<8x8xf32>
    %162 = math.exp %161 : vector<8x8xf32>
    %cst_59 = arith.constant dense<0.000000e+00> : vector<8xf32>
    %163 = vector.multi_reduction <add>, %162, %cst_59 [1] : vector<8x8xf32> to vector<8xf32>
    %164 = vector.shape_cast %163 : vector<8xf32> to vector<8x1xf32>
    %165 = vector.broadcast %164 : vector<8x1xf32> to vector<8x8xf32>
    %166 = arith.divf %162, %165 : vector<8x8xf32>
    %cst_60 = arith.constant dense<0.000000e+00> : vector<8x16xf32>
    %167 = tpu.matmul %166, %154, %cst_60 {dimension_numbers = #tpu.dot_dimension_numbers<[1], [0], [0], [1], [0, 0, 1, 1], [], []>} : vector<8x8xf32>, vector<8x16xf32>, vector<8x16xf32> -> vector<8x16xf32>
    %168 = vector.extract_strided_slice %151 {offsets = [8, 0], sizes = [8, 16], strides = [1, 1]} : vector<16x96xf32> to vector<8x16xf32>
    %169 = vector.extract_strided_slice %151 {offsets = [8, 32], sizes = [8, 16], strides = [1, 1]} : vector<16x96xf32> to vector<8x16xf32>
    %170 = vector.extract_strided_slice %151 {offsets = [8, 64], sizes = [8, 16], strides = [1, 1]} : vector<16x96xf32> to vector<8x16xf32>
    %cst_61 = arith.constant dense<0.000000e+00> : vector<8x8xf32>
    %171 = tpu.matmul %168, %169, %cst_61 {dimension_numbers = #tpu.dot_dimension_numbers<[1], [1], [0], [0], [0, 0, 1, 0], [], []>} : vector<8x16xf32>, vector<8x16xf32>, vector<8x8xf32> -> vector<8x8xf32>
    %cst_62 = arith.constant 2.500000e-01 : f32
    %172 = vector.broadcast %cst_62 : f32 to vector<8x8xf32>
    %173 = arith.mulf %171, %172 : vector<8x8xf32>
    %cst_63 = arith.constant dense<0xFF800000> : vector<8xf32>
    %174 = vector.multi_reduction <maximumf>, %173, %cst_63 [1] : vector<8x8xf32> to vector<8xf32>
    %175 = vector.shape_cast %174 : vector<8xf32> to vector<8x1xf32>
    %176 = vector.broadcast %175 : vector<8x1xf32> to vector<8x8xf32>
    %177 = arith.subf %173, %176 : vector<8x8xf32>
    %178 = math.exp %177 : vector<8x8xf32>
    %cst_64 = arith.constant dense<0.000000e+00> : vector<8xf32>
    %179 = vector.multi_reduction <add>, %178, %cst_64 [1] : vector<8x8xf32> to vector<8xf32>
    %180 = vector.shape_cast %179 : vector<8xf32> to vector<8x1xf32>
    %181 = vector.broadcast %180 : vector<8x1xf32> to vector<8x8xf32>
    %182 = arith.divf %178, %181 : vector<8x8xf32>
    %cst_65 = arith.constant dense<0.000000e+00> : vector<8x16xf32>
    %183 = tpu.matmul %182, %170, %cst_65 {dimension_numbers = #tpu.dot_dimension_numbers<[1], [0], [0], [1], [0, 0, 1, 1], [], []>} : vector<8x8xf32>, vector<8x16xf32>, vector<8x16xf32> -> vector<8x16xf32>
    %184 = tpu.concatenate %167, %183 in 0 : vector<8x16xf32>, vector<8x16xf32> -> vector<16x16xf32>
    %c304 = arith.constant 304 : index
    %c0_66 = arith.constant 0 : index
    %185 = vector.load %arg1[%c304, %c0_66] : memref<488x128xf32, #tpu.memory_space<vmem>>, vector<16x32xf32>
    %cst_67 = arith.constant dense<0.000000e+00> : vector<16x32xf32>
    %186 = tpu.matmul %184, %185, %cst_67 {dimension_numbers = #tpu.dot_dimension_numbers<[1], [0], [0], [1], [0, 0, 1, 1], [], []>} : vector<16x16xf32>, vector<16x32xf32>, vector<16x32xf32> -> vector<16x32xf32>
    %187 = vector.extract_strided_slice %151 {offsets = [0, 16], sizes = [8, 16], strides = [1, 1]} : vector<16x96xf32> to vector<8x16xf32>
    %188 = vector.extract_strided_slice %151 {offsets = [0, 48], sizes = [8, 16], strides = [1, 1]} : vector<16x96xf32> to vector<8x16xf32>
    %189 = vector.extract_strided_slice %151 {offsets = [0, 80], sizes = [8, 16], strides = [1, 1]} : vector<16x96xf32> to vector<8x16xf32>
    %cst_68 = arith.constant dense<0.000000e+00> : vector<8x8xf32>
    %190 = tpu.matmul %187, %188, %cst_68 {dimension_numbers = #tpu.dot_dimension_numbers<[1], [1], [0], [0], [0, 0, 1, 0], [], []>} : vector<8x16xf32>, vector<8x16xf32>, vector<8x8xf32> -> vector<8x8xf32>
    %cst_69 = arith.constant 2.500000e-01 : f32
    %191 = vector.broadcast %cst_69 : f32 to vector<8x8xf32>
    %192 = arith.mulf %190, %191 : vector<8x8xf32>
    %cst_70 = arith.constant dense<0xFF800000> : vector<8xf32>
    %193 = vector.multi_reduction <maximumf>, %192, %cst_70 [1] : vector<8x8xf32> to vector<8xf32>
    %194 = vector.shape_cast %193 : vector<8xf32> to vector<8x1xf32>
    %195 = vector.broadcast %194 : vector<8x1xf32> to vector<8x8xf32>
    %196 = arith.subf %192, %195 : vector<8x8xf32>
    %197 = math.exp %196 : vector<8x8xf32>
    %cst_71 = arith.constant dense<0.000000e+00> : vector<8xf32>
    %198 = vector.multi_reduction <add>, %197, %cst_71 [1] : vector<8x8xf32> to vector<8xf32>
    %199 = vector.shape_cast %198 : vector<8xf32> to vector<8x1xf32>
    %200 = vector.broadcast %199 : vector<8x1xf32> to vector<8x8xf32>
    %201 = arith.divf %197, %200 : vector<8x8xf32>
    %cst_72 = arith.constant dense<0.000000e+00> : vector<8x16xf32>
    %202 = tpu.matmul %201, %189, %cst_72 {dimension_numbers = #tpu.dot_dimension_numbers<[1], [0], [0], [1], [0, 0, 1, 1], [], []>} : vector<8x8xf32>, vector<8x16xf32>, vector<8x16xf32> -> vector<8x16xf32>
    %203 = vector.extract_strided_slice %151 {offsets = [8, 16], sizes = [8, 16], strides = [1, 1]} : vector<16x96xf32> to vector<8x16xf32>
    %204 = vector.extract_strided_slice %151 {offsets = [8, 48], sizes = [8, 16], strides = [1, 1]} : vector<16x96xf32> to vector<8x16xf32>
    %205 = vector.extract_strided_slice %151 {offsets = [8, 80], sizes = [8, 16], strides = [1, 1]} : vector<16x96xf32> to vector<8x16xf32>
    %cst_73 = arith.constant dense<0.000000e+00> : vector<8x8xf32>
    %206 = tpu.matmul %203, %204, %cst_73 {dimension_numbers = #tpu.dot_dimension_numbers<[1], [1], [0], [0], [0, 0, 1, 0], [], []>} : vector<8x16xf32>, vector<8x16xf32>, vector<8x8xf32> -> vector<8x8xf32>
    %cst_74 = arith.constant 2.500000e-01 : f32
    %207 = vector.broadcast %cst_74 : f32 to vector<8x8xf32>
    %208 = arith.mulf %206, %207 : vector<8x8xf32>
    %cst_75 = arith.constant dense<0xFF800000> : vector<8xf32>
    %209 = vector.multi_reduction <maximumf>, %208, %cst_75 [1] : vector<8x8xf32> to vector<8xf32>
    %210 = vector.shape_cast %209 : vector<8xf32> to vector<8x1xf32>
    %211 = vector.broadcast %210 : vector<8x1xf32> to vector<8x8xf32>
    %212 = arith.subf %208, %211 : vector<8x8xf32>
    %213 = math.exp %212 : vector<8x8xf32>
    %cst_76 = arith.constant dense<0.000000e+00> : vector<8xf32>
    %214 = vector.multi_reduction <add>, %213, %cst_76 [1] : vector<8x8xf32> to vector<8xf32>
    %215 = vector.shape_cast %214 : vector<8xf32> to vector<8x1xf32>
    %216 = vector.broadcast %215 : vector<8x1xf32> to vector<8x8xf32>
    %217 = arith.divf %213, %216 : vector<8x8xf32>
    %cst_77 = arith.constant dense<0.000000e+00> : vector<8x16xf32>
    %218 = tpu.matmul %217, %205, %cst_77 {dimension_numbers = #tpu.dot_dimension_numbers<[1], [0], [0], [1], [0, 0, 1, 1], [], []>} : vector<8x8xf32>, vector<8x16xf32>, vector<8x16xf32> -> vector<8x16xf32>
    %219 = tpu.concatenate %202, %218 in 0 : vector<8x16xf32>, vector<8x16xf32> -> vector<16x16xf32>
    %c320 = arith.constant 320 : index
    %c0_78 = arith.constant 0 : index
    %220 = vector.load %arg1[%c320, %c0_78] : memref<488x128xf32, #tpu.memory_space<vmem>>, vector<16x32xf32>
    %cst_79 = arith.constant dense<0.000000e+00> : vector<16x32xf32>
    %221 = tpu.matmul %219, %220, %cst_79 {dimension_numbers = #tpu.dot_dimension_numbers<[1], [0], [0], [1], [0, 0, 1, 1], [], []>} : vector<16x16xf32>, vector<16x32xf32>, vector<16x32xf32> -> vector<16x32xf32>
    %222 = arith.addf %186, %221 : vector<16x32xf32>
    %c336 = arith.constant 336 : index
    %c0_80 = arith.constant 0 : index
    %223 = vector.load %arg1[%c336, %c0_80] : memref<488x128xf32, #tpu.memory_space<vmem>>, vector<1x32xf32>
    %224 = vector.broadcast %223 : vector<1x32xf32> to vector<16x32xf32>
    %225 = arith.addf %222, %224 : vector<16x32xf32>
    %226 = arith.addf %146, %225 : vector<16x32xf32>
    %c344 = arith.constant 344 : index
    %c0_81 = arith.constant 0 : index
    %227 = vector.load %arg1[%c344, %c0_81] : memref<488x128xf32, #tpu.memory_space<vmem>>, vector<1x32xf32>
    %c352 = arith.constant 352 : index
    %c0_82 = arith.constant 0 : index
    %228 = vector.load %arg1[%c352, %c0_82] : memref<488x128xf32, #tpu.memory_space<vmem>>, vector<1x32xf32>
    %cst_83 = arith.constant dense<0.000000e+00> : vector<16xf32>
    %229 = vector.multi_reduction <add>, %226, %cst_83 [1] : vector<16x32xf32> to vector<16xf32>
    %230 = vector.shape_cast %229 : vector<16xf32> to vector<16x1xf32>
    %cst_84 = arith.constant 3.200000e+01 : f32
    %231 = vector.broadcast %cst_84 : f32 to vector<16x1xf32>
    %232 = arith.divf %230, %231 : vector<16x1xf32>
    %233 = vector.broadcast %232 : vector<16x1xf32> to vector<16x32xf32>
    %234 = arith.subf %226, %233 : vector<16x32xf32>
    %235 = arith.mulf %234, %234 : vector<16x32xf32>
    %cst_85 = arith.constant dense<0.000000e+00> : vector<16xf32>
    %236 = vector.multi_reduction <add>, %235, %cst_85 [1] : vector<16x32xf32> to vector<16xf32>
    %237 = vector.shape_cast %236 : vector<16xf32> to vector<16x1xf32>
    %cst_86 = arith.constant 3.200000e+01 : f32
    %238 = vector.broadcast %cst_86 : f32 to vector<16x1xf32>
    %239 = arith.divf %237, %238 : vector<16x1xf32>
    %240 = vector.broadcast %232 : vector<16x1xf32> to vector<16x32xf32>
    %241 = arith.subf %226, %240 : vector<16x32xf32>
    %cst_87 = arith.constant 9.99999974E-6 : f32
    %242 = vector.broadcast %cst_87 : f32 to vector<16x1xf32>
    %243 = arith.addf %239, %242 : vector<16x1xf32>
    %244 = math.rsqrt %243 : vector<16x1xf32>
    %245 = vector.broadcast %244 : vector<16x1xf32> to vector<16x32xf32>
    %246 = arith.mulf %241, %245 : vector<16x32xf32>
    %247 = vector.broadcast %227 : vector<1x32xf32> to vector<16x32xf32>
    %248 = arith.mulf %246, %247 : vector<16x32xf32>
    %249 = vector.broadcast %228 : vector<1x32xf32> to vector<16x32xf32>
    %250 = arith.addf %248, %249 : vector<16x32xf32>
    %c360 = arith.constant 360 : index
    %c0_88 = arith.constant 0 : index
    %251 = vector.load %arg1[%c360, %c0_88] : memref<488x128xf32, #tpu.memory_space<vmem>>, vector<32x64xf32>
    %cst_89 = arith.constant dense<0.000000e+00> : vector<16x64xf32>
    %252 = tpu.matmul %250, %251, %cst_89 {dimension_numbers = #tpu.dot_dimension_numbers<[1], [0], [0], [1], [0, 0, 1, 1], [], []>} : vector<16x32xf32>, vector<32x64xf32>, vector<16x64xf32> -> vector<16x64xf32>
    %c392 = arith.constant 392 : index
    %c0_90 = arith.constant 0 : index
    %253 = vector.load %arg1[%c392, %c0_90] : memref<488x128xf32, #tpu.memory_space<vmem>>, vector<1x64xf32>
    %254 = vector.broadcast %253 : vector<1x64xf32> to vector<16x64xf32>
    %255 = arith.addf %252, %254 : vector<16x64xf32>
    %cst_91 = arith.constant 0.000000e+00 : f32
    %256 = vector.broadcast %cst_91 : f32 to vector<16x64xf32>
    %257 = arith.maximumf %255, %256 : vector<16x64xf32>
    %c400 = arith.constant 400 : index
    %c0_92 = arith.constant 0 : index
    %258 = vector.load %arg1[%c400, %c0_92] : memref<488x128xf32, #tpu.memory_space<vmem>>, vector<64x32xf32>
    %cst_93 = arith.constant dense<0.000000e+00> : vector<16x32xf32>
    %259 = tpu.matmul %257, %258, %cst_93 {dimension_numbers = #tpu.dot_dimension_numbers<[1], [0], [0], [1], [0, 0, 1, 1], [], []>} : vector<16x64xf32>, vector<64x32xf32>, vector<16x32xf32> -> vector<16x32xf32>
    %c464 = arith.constant 464 : index
    %c0_94 = arith.constant 0 : index
    %260 = vector.load %arg1[%c464, %c0_94] : memref<488x128xf32, #tpu.memory_space<vmem>>, vector<1x32xf32>
    %261 = vector.broadcast %260 : vector<1x32xf32> to vector<16x32xf32>
    %262 = arith.addf %259, %261 : vector<16x32xf32>
    %263 = arith.addf %250, %262 : vector<16x32xf32>
    %c472 = arith.constant 472 : index
    %c0_95 = arith.constant 0 : index
    %264 = vector.load %arg1[%c472, %c0_95] : memref<488x128xf32, #tpu.memory_space<vmem>>, vector<1x32xf32>
    %c480 = arith.constant 480 : index
    %c0_96 = arith.constant 0 : index
    %265 = vector.load %arg1[%c480, %c0_96] : memref<488x128xf32, #tpu.memory_space<vmem>>, vector<1x32xf32>
    %cst_97 = arith.constant dense<0.000000e+00> : vector<16xf32>
    %266 = vector.multi_reduction <add>, %263, %cst_97 [1] : vector<16x32xf32> to vector<16xf32>
    %267 = vector.shape_cast %266 : vector<16xf32> to vector<16x1xf32>
    %cst_98 = arith.constant 3.200000e+01 : f32
    %268 = vector.broadcast %cst_98 : f32 to vector<16x1xf32>
    %269 = arith.divf %267, %268 : vector<16x1xf32>
    %270 = vector.broadcast %269 : vector<16x1xf32> to vector<16x32xf32>
    %271 = arith.subf %263, %270 : vector<16x32xf32>
    %272 = arith.mulf %271, %271 : vector<16x32xf32>
    %cst_99 = arith.constant dense<0.000000e+00> : vector<16xf32>
    %273 = vector.multi_reduction <add>, %272, %cst_99 [1] : vector<16x32xf32> to vector<16xf32>
    %274 = vector.shape_cast %273 : vector<16xf32> to vector<16x1xf32>
    %cst_100 = arith.constant 3.200000e+01 : f32
    %275 = vector.broadcast %cst_100 : f32 to vector<16x1xf32>
    %276 = arith.divf %274, %275 : vector<16x1xf32>
    %277 = vector.broadcast %269 : vector<16x1xf32> to vector<16x32xf32>
    %278 = arith.subf %263, %277 : vector<16x32xf32>
    %cst_101 = arith.constant 9.99999974E-6 : f32
    %279 = vector.broadcast %cst_101 : f32 to vector<16x1xf32>
    %280 = arith.addf %276, %279 : vector<16x1xf32>
    %281 = math.rsqrt %280 : vector<16x1xf32>
    %282 = vector.broadcast %281 : vector<16x1xf32> to vector<16x32xf32>
    %283 = arith.mulf %278, %282 : vector<16x32xf32>
    %284 = vector.broadcast %264 : vector<1x32xf32> to vector<16x32xf32>
    %285 = arith.mulf %283, %284 : vector<16x32xf32>
    %286 = vector.broadcast %265 : vector<1x32xf32> to vector<16x32xf32>
    %287 = arith.addf %285, %286 : vector<16x32xf32>
    %c24 = arith.constant 24 : index
    %c0_102 = arith.constant 0 : index
    %288 = vector.load %arg1[%c24, %c0_102] : memref<488x128xf32, #tpu.memory_space<vmem>>, vector<1x32xf32>
    %289 = vector.broadcast %288 : vector<1x32xf32> to vector<16x32xf32>
    %290 = arith.mulf %287, %289 : vector<16x32xf32>
    %cst_103 = arith.constant dense<0.000000e+00> : vector<16xf32>
    %291 = vector.multi_reduction <add>, %290, %cst_103 [1] : vector<16x32xf32> to vector<16xf32>
    %292 = vector.shape_cast %291 : vector<16xf32> to vector<16x1xf32>
    %c32 = arith.constant 32 : index
    %c0_104 = arith.constant 0 : index
    %293 = vector.load %arg1[%c32, %c0_104] : memref<488x128xf32, #tpu.memory_space<vmem>>, vector<1x1xf32>
    %294 = vector.broadcast %293 : vector<1x1xf32> to vector<16x1xf32>
    %295 = arith.addf %292, %294 : vector<16x1xf32>
    %c0_105 = arith.constant 0 : index
    %c0_106 = arith.constant 0 : index
    %296 = vector.load %arg2[%c0_105, %c0_106] : memref<16x1xf32, #tpu.memory_space<vmem>>, vector<16x1xf32>
    tpu.vector_store %arg2[%c0_105, %c0_106], %295 {strides = array<i32>} : memref<16x1xf32, #tpu.memory_space<vmem>>, vector<16x1xf32>,
    return
  }
}

</mosaic_0001>

<llo_original>
// kernel: simple_transformer_forward.1
$region0: #{simple_transformer_forward.1}
  #allocation0 [shape = 'u32[]', space=smem, size = 0x4, offset = 0x4, fixed_abs, tag = 'smem constant byte address 0x4 - core index']
  #allocation1 [shape = 'u32[72,128]{1,0:T(1,128)}', space=vmem, size = 0x9000, scoped, tag = 'internal scratch']
  %s0 = inlined_call_operand.vmem [shape: f32[16,16], index: 0, kind: input, shape index: {}]
  %s1 = inlined_call_operand.hbm [shape: f32[488,128], index: 1, kind: input, shape index: {}]
  %s2 = inlined_call_operand.vmem [shape: f32[16,1], index: 2, kind: output, shape index: {}]
  %s3 = sld [smem:[#allocation0]]
  $region22: #{simple_transformer_forward.1} parent=0
    _
  %s5 = ssub.s32 1, %s3
  %s6 = scalar_select 0, %s5, %s3
  $region1: #{simple_transformer_forward.1} parent=0
    #allocation2 [shape = 'u8[249856]{0}', space=vmem, size = 0x3d000, scoped, tag = 'input window, operand 1, single buffered']
    #allocation3 [shape = 's32[1]{0}', space=sflag, size = 0x4, scoped, tag = 'scoped memory for simple_transformer_forward.1']
    %7 = vsyncpa [#allocation3], 0
    // Predicated region
    $region2: #{simple_transformer_forward.1} parent=1 // pred_check
      _
    $region3: #{simple_transformer_forward.1} parent=1 // pred_check_branch
      %9 = sbr.rel (0) target = $region5
    $region4: #{simple_transformer_forward.1} parent=1 // pred_region
      _
    $region5: #{simple_transformer_forward.1} parent=1 // pred_fallthru
      _
    // Predicated region
    $region6: #{simple_transformer_forward.1} parent=1 // pred_check
      _
    $region7: #{simple_transformer_forward.1} parent=1 // pred_check_branch
      %11 = sbr.rel (0) target = $region9
    $region8: #{simple_transformer_forward.1} parent=1 // pred_region
      %13 = vsyncadd [#allocation3], 0
      %s14 = sshll.u32 %s1, 4
      %s15 = int_to_ptr.hbm [resolvable:$true] %s14
      %s16 = sshll.u32 [#allocation2], 4
      %s17 = int_to_ptr.vmem [resolvable:$true] %s16
      %22 = dma.hbm_to_vmem [thread:$0]  %s15, 7808, %s17, [#allocation3], 128, 128, 8
    $region9: #{simple_transformer_forward.1} parent=1 // pred_fallthru
      _
    // Predicated region
    $region10: #{simple_transformer_forward.1} parent=1 // pred_check
      _
    $region11: #{simple_transformer_forward.1} parent=1 // pred_check_branch
      %24 = sbr.rel (0) target = $region13
    $region12: #{simple_transformer_forward.1} parent=1 // pred_region
      %26 = dma.done [#allocation3], 7808
    $region13: #{simple_transformer_forward.1} parent=1 // pred_fallthru
      _
    %v27 = vld [vmem:[%s0] sm:$0xff]
    %v28 = vld [vmem:[%s0 + $0x8] sm:$0xff]
    %v29 = vld [vmem:[#allocation2] sm:$0xff]
    %v30 = vld [vmem:[#allocation2 + $0x8] sm:$0xff]
    %v31 = vld [vmem:[#allocation2 + $0x10] sm:$0x1]
    %v32 = vperm.slane %v31, 0
    %vm33 = vcmask 130048
    %v35 = vsel %vm33, %v27, 0
    %v38 = vsel %vm33, %v28, 0
    %40 = vmatpush.msra.mxu0 0.0
    %41 = vmatpush.msra.mxu0 0.0
    %42 = vmatpush.msra.mxu0 0.0
    %43 = vmatpush.msra.mxu0 0.0
    %44 = vmatpush.msra.mxu0 0.0
    %45 = vmatpush.msra.mxu0 0.0
    %46 = vmatpush.msra.mxu0 0.0
    %47 = vmatpush.msra.mxu0 0.0
    %48 = vmatpush.msra.mxu0 0.0
    %49 = vmatpush.msra.mxu0 0.0
    %50 = vmatpush.msra.mxu0 0.0
    %51 = vmatpush.msra.mxu0 0.0
    %52 = vmatpush.msra.mxu0 0.0
    %53 = vmatpush.msra.mxu0 0.0
    %54 = vmatpush.msra.mxu0 %v30
    %55 = vmatpush.msra.mxu0 %v29
    %56 = vmatmul.f32.gmra.mxu0 %v35
    %v57 = vpop.f32.mrf.mxu0
    %v58 = vadd.f32 %v32, %v57
    %59 = vmatmul.f32.gmra.mxu0 %v38
    %v60 = vpop.f32.mrf.mxu0
    %v61 = vadd.f32 %v32, %v60
    %62 = vdwg.mxu0
    %v63 = vld [vmem:[#allocation2 + $0x28] sm:$0xff]
    %v64 = vld [vmem:[#allocation2 + $0x30] sm:$0xff]
    %v65 = vld [vmem:[#allocation2 + $0x38] sm:$0xff]
    %v66 = vld [vmem:[#allocation2 + $0x40] sm:$0xff]
    %v67 = vld [vmem:[#allocation2 + $0x48] sm:$0x1]
    %v68 = vperm.slane %v67, 0
    %vm69 = vcmask 261120
    %v71 = vsel %vm69, %v58, 0
    %v74 = vsel %vm69, %v61, 0
    %76 = vmatpush.msra.mxu0 0.0
    %77 = vmatpush.msra.mxu0 0.0
    %78 = vmatpush.msra.mxu0 0.0
    %79 = vmatpush.msra.mxu0 0.0
    %80 = vmatpush.msra.mxu0 0.0
    %81 = vmatpush.msra.mxu0 0.0
    %82 = vmatpush.msra.mxu0 0.0
    %83 = vmatpush.msra.mxu0 0.0
    %84 = vmatpush.msra.mxu0 0.0
    %85 = vmatpush.msra.mxu0 0.0
    %86 = vmatpush.msra.mxu0 0.0
    %87 = vmatpush.msra.mxu0 0.0
    %88 = vmatpush.msra.mxu0 %v66
    %89 = vmatpush.msra.mxu0 %v65
    %90 = vmatpush.msra.mxu0 %v64
    %91 = vmatpush.msra.mxu0 %v63
    %92 = vmatmul.f32.gmra.mxu0 %v71
    %v93 = vpop.f32.mrf.mxu0
    %v94 = vadd.f32 %v68, %v93
    %95 = vmatmul.f32.gmra.mxu0 %v74
    %v96 = vpop.f32.mrf.mxu0
    %v97 = vadd.f32 %v68, %v96
    %98 = vdwg.mxu0
    %100 = vrot.lane.b32.xlu0 %v94, 96
    %v101 = vpop.permute.xlu0 %100
    %v102 = vsel %vm33, %v94, 0
    %v104 = vsel %vm33, %v101, 0
    %106 = vmatpush.xpose.msra.mxu0 0.0
    %107 = vmatpush.xpose.msra.mxu0 0.0
    %108 = vmatpush.xpose.msra.mxu0 0.0
    %109 = vmatpush.xpose.msra.mxu0 0.0
    %110 = vmatpush.xpose.msra.mxu0 0.0
    %111 = vmatpush.xpose.msra.mxu0 0.0
    %112 = vmatpush.xpose.msra.mxu0 0.0
    %113 = vmatpush.xpose.msra.mxu0 0.0
    %114 = vmatpush.xpose.msra.mxu0 0.0
    %115 = vmatpush.xpose.msra.mxu0 0.0
    %116 = vmatpush.xpose.msra.mxu0 0.0
    %117 = vmatpush.xpose.msra.mxu0 0.0
    %118 = vmatpush.xpose.msra.mxu0 0.0
    %119 = vmatpush.xpose.msra.mxu0 0.0
    %120 = vmatpush.xpose.msra.mxu0 0.0
    %121 = vmatpush.xpose.msra.mxu0 %v104
    %122 = vmatmul.f32.gmra.mxu0 %v102
    %v123 = vpop.f32.mrf.mxu0
    %v124 = vadd.f32 0.0, %v123
    %125 = vdwg.mxu0
    %v126 = vmul.f32 %v124, 0.25
    %vm127 = vcmask 64512
    %v128 = vsel %vm127, %v126, -inf
    %129 = vmax.xlane.f32.xlu0 %v128
    %v130 = vpop.xlane.xlu0 %129
    %v131 = vsub.f32 %v126, %v130
    %v132 = vmul.f32 %v131, 1.442695
    %v133 = vpow.pop %v132
    %v134 = vsel %vm127, %v133, 0.0
    %135 = vadd.xlane.f32.xlu0 %v134
    %v136 = vpop.xlane.xlu0 %135
    %v137 = vrcp.pop %v136
    %v138 = vmul.f32 %v136, %v137
    %v139 = vsub.f32 1.0, %v138
    %v140 = vmul.f32 %v137, %v139
    %v141 = vadd.f32 %v137, %v140
    %vm142 = vweird.f32 %v136
    %vm143 = vweird.f32 %v137
    %vm144 = vmor %vm142, %vm143
    %v145 = vsel %vm144, %v137, %v141
    %v146 = vand.u32 2147483647, %v136
    %vm147 = vcmp.eq.f32.partialorder %v146, 8.507059e+37
    %v148 = vand.u32 %v136, 2147483648
    %v149 = vor.u32 1.1754944e-38, %v148
    %v150 = vsel %vm147, %v149, %v145
    %v151 = vmul.f32 %v133, %v150
    %152 = vrot.lane.b32.xlu0 %v94, 64
    %v153 = vpop.permute.xlu0 %152
    %v156 = vsel %vm127, %v151, 0
    %158 = vmatpush.msra.mxu0 0.0
    %159 = vmatpush.msra.mxu0 0.0
    %160 = vmatpush.msra.mxu0 0.0
    %161 = vmatpush.msra.mxu0 0.0
    %162 = vmatpush.msra.mxu0 0.0
    %163 = vmatpush.msra.mxu0 0.0
    %164 = vmatpush.msra.mxu0 0.0
    %165 = vmatpush.msra.mxu0 0.0
    %166 = vmatpush.msra.mxu0 0.0
    %167 = vmatpush.msra.mxu0 0.0
    %168 = vmatpush.msra.mxu0 0.0
    %169 = vmatpush.msra.mxu0 0.0
    %170 = vmatpush.msra.mxu0 0.0
    %171 = vmatpush.msra.mxu0 0.0
    %172 = vmatpush.msra.mxu0 0.0
    %173 = vmatpush.msra.mxu0 %v153
    %174 = vmatmul.f32.gmra.mxu0 %v156
    %v175 = vpop.f32.mrf.mxu0
    %v176 = vadd.f32 0.0, %v175
    %177 = vdwg.mxu0
    %179 = vrot.lane.b32.xlu0 %v97, 96
    %v180 = vpop.permute.xlu0 %179
    %v181 = vsel %vm33, %v97, 0
    %v183 = vsel %vm33, %v180, 0
    %185 = vmatpush.xpose.msra.mxu0 0.0
    %186 = vmatpush.xpose.msra.mxu0 0.0
    %187 = vmatpush.xpose.msra.mxu0 0.0
    %188 = vmatpush.xpose.msra.mxu0 0.0
    %189 = vmatpush.xpose.msra.mxu0 0.0
    %190 = vmatpush.xpose.msra.mxu0 0.0
    %191 = vmatpush.xpose.msra.mxu0 0.0
    %192 = vmatpush.xpose.msra.mxu0 0.0
    %193 = vmatpush.xpose.msra.mxu0 0.0
    %194 = vmatpush.xpose.msra.mxu0 0.0
    %195 = vmatpush.xpose.msra.mxu0 0.0
    %196 = vmatpush.xpose.msra.mxu0 0.0
    %197 = vmatpush.xpose.msra.mxu0 0.0
    %198 = vmatpush.xpose.msra.mxu0 0.0
    %199 = vmatpush.xpose.msra.mxu0 0.0
    %200 = vmatpush.xpose.msra.mxu0 %v183
    %201 = vmatmul.f32.gmra.mxu0 %v181
    %v202 = vpop.f32.mrf.mxu0
    %v203 = vadd.f32 0.0, %v202
    %204 = vdwg.mxu0
    %v205 = vmul.f32 %v203, 0.25
    %v206 = vsel %vm127, %v205, -inf
    %207 = vmax.xlane.f32.xlu0 %v206
    %v208 = vpop.xlane.xlu0 %207
    %v209 = vsub.f32 %v205, %v208
    %v210 = vmul.f32 %v209, 1.442695
    %v211 = vpow.pop %v210
    %v212 = vsel %vm127, %v211, 0.0
    %213 = vadd.xlane.f32.xlu0 %v212
    %v214 = vpop.xlane.xlu0 %213
    %v215 = vrcp.pop %v214
    %v216 = vmul.f32 %v214, %v215
    %v217 = vsub.f32 1.0, %v216
    %v218 = vmul.f32 %v215, %v217
    %v219 = vadd.f32 %v215, %v218
    %vm220 = vweird.f32 %v214
    %vm221 = vweird.f32 %v215
    %vm222 = vmor %vm220, %vm221
    %v223 = vsel %vm222, %v215, %v219
    %v224 = vand.u32 2147483647, %v214
    %vm225 = vcmp.eq.f32.partialorder %v224, 8.507059e+37
    %v226 = vand.u32 %v214, 2147483648
    %v227 = vor.u32 1.1754944e-38, %v226
    %v228 = vsel %vm225, %v227, %v223
    %v229 = vmul.f32 %v211, %v228
    %230 = vrot.lane.b32.xlu0 %v97, 64
    %v231 = vpop.permute.xlu0 %230
    %v234 = vsel %vm127, %v229, 0
    %236 = vmatpush.msra.mxu0 0.0
    %237 = vmatpush.msra.mxu0 0.0
    %238 = vmatpush.msra.mxu0 0.0
    %239 = vmatpush.msra.mxu0 0.0
    %240 = vmatpush.msra.mxu0 0.0
    %241 = vmatpush.msra.mxu0 0.0
    %242 = vmatpush.msra.mxu0 0.0
    %243 = vmatpush.msra.mxu0 0.0
    %244 = vmatpush.msra.mxu0 0.0
    %245 = vmatpush.msra.mxu0 0.0
    %246 = vmatpush.msra.mxu0 0.0
    %247 = vmatpush.msra.mxu0 0.0
    %248 = vmatpush.msra.mxu0 0.0
    %249 = vmatpush.msra.mxu0 0.0
    %250 = vmatpush.msra.mxu0 0.0
    %251 = vmatpush.msra.mxu0 %v231
    %252 = vmatmul.f32.gmra.mxu0 %v234
    %v253 = vpop.f32.mrf.mxu0
    %v254 = vadd.f32 0.0, %v253
    %255 = vdwg.mxu0
    %v256 = vld [vmem:[#allocation2 + $0x50] sm:$0xff]
    %v257 = vld [vmem:[#allocation2 + $0x58] sm:$0xff]
    %258 = vrot.lane.b32.xlu0 %v94, 112
    %v259 = vpop.permute.xlu0 %258
    %260 = vrot.lane.b32.xlu0 %v94, 80
    %v261 = vpop.permute.xlu0 %260
    %v262 = vsel %vm33, %v259, 0
    %v264 = vsel %vm33, %v261, 0
    %266 = vmatpush.xpose.msra.mxu0 0.0
    %267 = vmatpush.xpose.msra.mxu0 0.0
    %268 = vmatpush.xpose.msra.mxu0 0.0
    %269 = vmatpush.xpose.msra.mxu0 0.0
    %270 = vmatpush.xpose.msra.mxu0 0.0
    %271 = vmatpush.xpose.msra.mxu0 0.0
    %272 = vmatpush.xpose.msra.mxu0 0.0
    %273 = vmatpush.xpose.msra.mxu0 0.0
    %274 = vmatpush.xpose.msra.mxu0 0.0
    %275 = vmatpush.xpose.msra.mxu0 0.0
    %276 = vmatpush.xpose.msra.mxu0 0.0
    %277 = vmatpush.xpose.msra.mxu0 0.0
    %278 = vmatpush.xpose.msra.mxu0 0.0
    %279 = vmatpush.xpose.msra.mxu0 0.0
    %280 = vmatpush.xpose.msra.mxu0 0.0
    %281 = vmatpush.xpose.msra.mxu0 %v264
    %282 = vmatmul.f32.gmra.mxu0 %v262
    %v283 = vpop.f32.mrf.mxu0
    %v284 = vadd.f32 0.0, %v283
    %285 = vdwg.mxu0
    %v286 = vmul.f32 %v284, 0.25
    %v287 = vsel %vm127, %v286, -inf
    %288 = vmax.xlane.f32.xlu0 %v287
    %v289 = vpop.xlane.xlu0 %288
    %v290 = vsub.f32 %v286, %v289
    %v291 = vmul.f32 %v290, 1.442695
    %v292 = vpow.pop %v291
    %v293 = vsel %vm127, %v292, 0.0
    %294 = vadd.xlane.f32.xlu0 %v293
    %v295 = vpop.xlane.xlu0 %294
    %v296 = vrcp.pop %v295
    %v297 = vmul.f32 %v295, %v296
    %v298 = vsub.f32 1.0, %v297
    %v299 = vmul.f32 %v296, %v298
    %v300 = vadd.f32 %v296, %v299
    %vm301 = vweird.f32 %v295
    %vm302 = vweird.f32 %v296
    %vm303 = vmor %vm301, %vm302
    %v304 = vsel %vm303, %v296, %v300
    %v305 = vand.u32 2147483647, %v295
    %vm306 = vcmp.eq.f32.partialorder %v305, 8.507059e+37
    %v307 = vand.u32 %v295, 2147483648
    %v308 = vor.u32 1.1754944e-38, %v307
    %v309 = vsel %vm306, %v308, %v304
    %v310 = vmul.f32 %v292, %v309
    %311 = vrot.lane.b32.xlu0 %v94, 48
    %v312 = vpop.permute.xlu0 %311
    %v315 = vsel %vm127, %v310, 0
    %317 = vmatpush.msra.mxu0 0.0
    %318 = vmatpush.msra.mxu0 0.0
    %319 = vmatpush.msra.mxu0 0.0
    %320 = vmatpush.msra.mxu0 0.0
    %321 = vmatpush.msra.mxu0 0.0
    %322 = vmatpush.msra.mxu0 0.0
    %323 = vmatpush.msra.mxu0 0.0
    %324 = vmatpush.msra.mxu0 0.0
    %325 = vmatpush.msra.mxu0 0.0
    %326 = vmatpush.msra.mxu0 0.0
    %327 = vmatpush.msra.mxu0 0.0
    %328 = vmatpush.msra.mxu0 0.0
    %329 = vmatpush.msra.mxu0 0.0
    %330 = vmatpush.msra.mxu0 0.0
    %331 = vmatpush.msra.mxu0 0.0
    %332 = vmatpush.msra.mxu0 %v312
    %333 = vmatmul.f32.gmra.mxu0 %v315
    %v334 = vpop.f32.mrf.mxu0
    %v335 = vadd.f32 0.0, %v334
    %336 = vdwg.mxu0
    %337 = vrot.lane.b32.xlu0 %v97, 112
    %v338 = vpop.permute.xlu0 %337
    %339 = vrot.lane.b32.xlu0 %v97, 80
    %v340 = vpop.permute.xlu0 %339
    %v341 = vsel %vm33, %v338, 0
    %v343 = vsel %vm33, %v340, 0
    %345 = vmatpush.xpose.msra.mxu0 0.0
    %346 = vmatpush.xpose.msra.mxu0 0.0
    %347 = vmatpush.xpose.msra.mxu0 0.0
    %348 = vmatpush.xpose.msra.mxu0 0.0
    %349 = vmatpush.xpose.msra.mxu0 0.0
    %350 = vmatpush.xpose.msra.mxu0 0.0
    %351 = vmatpush.xpose.msra.mxu0 0.0
    %352 = vmatpush.xpose.msra.mxu0 0.0
    %353 = vmatpush.xpose.msra.mxu0 0.0
    %354 = vmatpush.xpose.msra.mxu0 0.0
    %355 = vmatpush.xpose.msra.mxu0 0.0
    %356 = vmatpush.xpose.msra.mxu0 0.0
    %357 = vmatpush.xpose.msra.mxu0 0.0
    %358 = vmatpush.xpose.msra.mxu0 0.0
    %359 = vmatpush.xpose.msra.mxu0 0.0
    %360 = vmatpush.xpose.msra.mxu0 %v343
    %361 = vmatmul.f32.gmra.mxu0 %v341
    %v362 = vpop.f32.mrf.mxu0
    %v363 = vadd.f32 0.0, %v362
    %364 = vdwg.mxu0
    %v365 = vmul.f32 %v363, 0.25
    %v366 = vsel %vm127, %v365, -inf
    %367 = vmax.xlane.f32.xlu0 %v366
    %v368 = vpop.xlane.xlu0 %367
    %v369 = vsub.f32 %v365, %v368
    %v370 = vmul.f32 %v369, 1.442695
    %v371 = vpow.pop %v370
    %v372 = vsel %vm127, %v371, 0.0
    %373 = vadd.xlane.f32.xlu0 %v372
    %v374 = vpop.xlane.xlu0 %373
    %v375 = vrcp.pop %v374
    %v376 = vmul.f32 %v374, %v375
    %v377 = vsub.f32 1.0, %v376
    %v378 = vmul.f32 %v375, %v377
    %v379 = vadd.f32 %v375, %v378
    %vm380 = vweird.f32 %v374
    %vm381 = vweird.f32 %v375
    %vm382 = vmor %vm380, %vm381
    %v383 = vsel %vm382, %v375, %v379
    %v384 = vand.u32 2147483647, %v374
    %vm385 = vcmp.eq.f32.partialorder %v384, 8.507059e+37
    %v386 = vand.u32 %v374, 2147483648
    %v387 = vor.u32 1.1754944e-38, %v386
    %v388 = vsel %vm385, %v387, %v383
    %v389 = vmul.f32 %v371, %v388
    %390 = vrot.lane.b32.xlu0 %v97, 48
    %v391 = vpop.permute.xlu0 %390
    %v394 = vsel %vm127, %v389, 0
    %396 = vmatpush.msra.mxu0 0.0
    %397 = vmatpush.msra.mxu0 0.0
    %398 = vmatpush.msra.mxu0 0.0
    %399 = vmatpush.msra.mxu0 0.0
    %400 = vmatpush.msra.mxu0 0.0
    %401 = vmatpush.msra.mxu0 0.0
    %402 = vmatpush.msra.mxu0 0.0
    %403 = vmatpush.msra.mxu0 0.0
    %404 = vmatpush.msra.mxu0 0.0
    %405 = vmatpush.msra.mxu0 0.0
    %406 = vmatpush.msra.mxu0 0.0
    %407 = vmatpush.msra.mxu0 0.0
    %408 = vmatpush.msra.mxu0 0.0
    %409 = vmatpush.msra.mxu0 0.0
    %410 = vmatpush.msra.mxu0 0.0
    %411 = vmatpush.msra.mxu0 %v391
    %412 = vmatmul.f32.gmra.mxu0 %v394
    %v413 = vpop.f32.mrf.mxu0
    %v414 = vadd.f32 0.0, %v413
    %415 = vdwg.mxu0
    %v416 = vld [vmem:[#allocation2 + $0x60] sm:$0xff]
    %v417 = vld [vmem:[#allocation2 + $0x68] sm:$0xff]
    %v419 = vsel %vm33, %v335, 0
    %v422 = vsel %vm33, %v414, 0
    %424 = vmatpush.msra.mxu0 0.0
    %425 = vmatpush.msra.mxu0 0.0
    %426 = vmatpush.msra.mxu0 0.0
    %427 = vmatpush.msra.mxu0 0.0
    %428 = vmatpush.msra.mxu0 0.0
    %429 = vmatpush.msra.mxu0 0.0
    %430 = vmatpush.msra.mxu0 0.0
    %431 = vmatpush.msra.mxu0 0.0
    %432 = vmatpush.msra.mxu0 0.0
    %433 = vmatpush.msra.mxu0 0.0
    %434 = vmatpush.msra.mxu0 0.0
    %435 = vmatpush.msra.mxu0 0.0
    %436 = vmatpush.msra.mxu0 0.0
    %437 = vmatpush.msra.mxu0 0.0
    %438 = vmatpush.msra.mxu0 %v417
    %439 = vmatpush.msra.mxu0 %v416
    %440 = vmatmul.f32.gmra.mxu0 %v419
    %v441 = vpop.f32.mrf.mxu0
    %v442 = vadd.f32 0.0, %v441
    %443 = vmatmul.f32.gmra.mxu0 %v422
    %v444 = vpop.f32.mrf.mxu0
    %v445 = vadd.f32 0.0, %v444
    %446 = vdwg.mxu0
    %v448 = vsel %vm33, %v176, 0
    %v451 = vsel %vm33, %v254, 0
    %453 = vmatpush.msra.mxu0 0.0
    %454 = vmatpush.msra.mxu0 0.0
    %455 = vmatpush.msra.mxu0 0.0
    %456 = vmatpush.msra.mxu0 0.0
    %457 = vmatpush.msra.mxu0 0.0
    %458 = vmatpush.msra.mxu0 0.0
    %459 = vmatpush.msra.mxu0 0.0
    %460 = vmatpush.msra.mxu0 0.0
    %461 = vmatpush.msra.mxu0 0.0
    %462 = vmatpush.msra.mxu0 0.0
    %463 = vmatpush.msra.mxu0 0.0
    %464 = vmatpush.msra.mxu0 0.0
    %465 = vmatpush.msra.mxu0 0.0
    %466 = vmatpush.msra.mxu0 0.0
    %467 = vmatpush.msra.mxu0 %v257
    %468 = vmatpush.msra.mxu0 %v256
    %469 = vmatmul.f32.gmra.mxu0 %v448
    %v470 = vpop.f32.mrf.mxu0
    %v471 = vadd.f32 %v442, %v470
    %472 = vmatmul.f32.gmra.mxu0 %v451
    %v473 = vpop.f32.mrf.mxu0
    %v474 = vadd.f32 %v445, %v473
    %475 = vdwg.mxu0
    %v476 = vld [vmem:[#allocation2 + $0x70] sm:$0x1]
    %v477 = vperm.slane %v476, 0
    %v478 = vadd.f32 %v471, %v477
    %v479 = vadd.f32 %v474, %v477
    %v480 = vadd.f32 %v58, %v478
    %v481 = vadd.f32 %v61, %v479
    %v482 = vld [vmem:[#allocation2 + $0x78] sm:$0x1]
    %v483 = vld [vmem:[#allocation2 + $0x80] sm:$0x1]
    %v484 = vsel %vm69, %v480, 0.0
    %485 = vadd.xlane.f32.xlu0 %v484
    %v486 = vpop.xlane.xlu0 %485
    %v487 = vsel %vm69, %v481, 0.0
    %488 = vadd.xlane.f32.xlu0 %v487
    %v489 = vpop.xlane.xlu0 %488
    %v490 = vrcp.pop 32.0
    %v491 = vmul.f32 32.0, %v490
    %v492 = vsub.f32 1.0, %v491
    %v493 = vmul.f32 %v490, %v492
    %v494 = vadd.f32 %v490, %v493
    %vm495 = vweird.f32 %v490
    %v496 = vsel %vm495, %v490, %v494
    %v497 = vmul.f32 %v486, %v496
    %v498 = vmul.f32 %v489, %v496
    %v499 = vsub.f32 %v480, %v497
    %v500 = vsub.f32 %v481, %v498
    %v501 = vmul.f32 %v499, %v499
    %v502 = vmul.f32 %v500, %v500
    %v503 = vsel %vm69, %v501, 0.0
    %504 = vadd.xlane.f32.xlu0 %v503
    %v505 = vpop.xlane.xlu0 %504
    %v506 = vsel %vm69, %v502, 0.0
    %507 = vadd.xlane.f32.xlu0 %v506
    %v508 = vpop.xlane.xlu0 %507
    %v509 = vmul.f32 %v505, %v496
    %v510 = vmul.f32 %v508, %v496
    %v511 = vadd.f32 %v509, 1e-05
    %v512 = vadd.f32 %v510, 1e-05
    %v513 = vrsqrt.pop %v511
    %v514 = vmul.f32 %v513, %v511
    %v515 = vmul.f32 %v514, %v513
    %v516 = vmul.f32 0.5, %v515
    %v517 = vsub.f32 1.5, %v516
    %v518 = vmul.f32 %v513, %v517
    %vm519 = vweird.f32 %v511
    %vm520 = vweird.f32 %v513
    %vm521 = vmor %vm519, %vm520
    %v522 = vsel %vm521, %v513, %v518
    %v523 = vrsqrt.pop %v512
    %v524 = vmul.f32 %v523, %v512
    %v525 = vmul.f32 %v524, %v523
    %v526 = vmul.f32 0.5, %v525
    %v527 = vsub.f32 1.5, %v526
    %v528 = vmul.f32 %v523, %v527
    %vm529 = vweird.f32 %v512
    %vm530 = vweird.f32 %v523
    %vm531 = vmor %vm529, %vm530
    %v532 = vsel %vm531, %v523, %v528
    %v533 = vmul.f32 %v499, %v522
    %v534 = vmul.f32 %v500, %v532
    %v535 = vperm.slane %v482, 0
    %v536 = vmul.f32 %v533, %v535
    %v537 = vmul.f32 %v534, %v535
    %v538 = vperm.slane %v483, 0
    %v539 = vadd.f32 %v536, %v538
    %v540 = vadd.f32 %v537, %v538
    %v541 = vld [vmem:[#allocation2 + $0x88] sm:$0xff]
    %v542 = vld [vmem:[#allocation2 + $0x90] sm:$0xff]
    %v543 = vld [vmem:[#allocation2 + $0x98] sm:$0xff]
    %v544 = vld [vmem:[#allocation2 + $0xa0] sm:$0xff]
    %v545 = vld [vmem:[#allocation2 + $0xa8] sm:$0x1]
    %v546 = vperm.slane %v545, 0
    %v548 = vsel %vm69, %v539, 0
    %v551 = vsel %vm69, %v540, 0
    %553 = vmatpush.msra.mxu0 0.0
    %554 = vmatpush.msra.mxu0 0.0
    %555 = vmatpush.msra.mxu0 0.0
    %556 = vmatpush.msra.mxu0 0.0
    %557 = vmatpush.msra.mxu0 0.0
    %558 = vmatpush.msra.mxu0 0.0
    %559 = vmatpush.msra.mxu0 0.0
    %560 = vmatpush.msra.mxu0 0.0
    %561 = vmatpush.msra.mxu0 0.0
    %562 = vmatpush.msra.mxu0 0.0
    %563 = vmatpush.msra.mxu0 0.0
    %564 = vmatpush.msra.mxu0 0.0
    %565 = vmatpush.msra.mxu0 %v544
    %566 = vmatpush.msra.mxu0 %v543
    %567 = vmatpush.msra.mxu0 %v542
    %568 = vmatpush.msra.mxu0 %v541
    %569 = vmatmul.f32.gmra.mxu0 %v548
    %v570 = vpop.f32.mrf.mxu0
    %v571 = vadd.f32 %v546, %v570
    %572 = vmatmul.f32.gmra.mxu0 %v551
    %v573 = vpop.f32.mrf.mxu0
    %v574 = vadd.f32 %v546, %v573
    %575 = vdwg.mxu0
    %v576 = vmax.f32 %v571, 0.0
    %v577 = vmax.f32 %v574, 0.0
    %v578 = vld [vmem:[#allocation2 + $0xb0] sm:$0xff]
    %v579 = vld [vmem:[#allocation2 + $0xb8] sm:$0xff]
    %v580 = vld [vmem:[#allocation2 + $0xc0] sm:$0xff]
    %v581 = vld [vmem:[#allocation2 + $0xc8] sm:$0xff]
    %v582 = vld [vmem:[#allocation2 + $0xd0] sm:$0xff]
    %v583 = vld [vmem:[#allocation2 + $0xd8] sm:$0xff]
    %v584 = vld [vmem:[#allocation2 + $0xe0] sm:$0xff]
    %v585 = vld [vmem:[#allocation2 + $0xe8] sm:$0xff]
    %v586 = vld [vmem:[#allocation2 + $0xf0] sm:$0x1]
    %v587 = vperm.slane %v586, 0
    %vm588 = vcmask 523264
    %v590 = vsel %vm588, %v576, 0
    %v593 = vsel %vm588, %v577, 0
    %595 = vmatpush.msra.mxu0 0.0
    %596 = vmatpush.msra.mxu0 0.0
    %597 = vmatpush.msra.mxu0 0.0
    %598 = vmatpush.msra.mxu0 0.0
    %599 = vmatpush.msra.mxu0 0.0
    %600 = vmatpush.msra.mxu0 0.0
    %601 = vmatpush.msra.mxu0 0.0
    %602 = vmatpush.msra.mxu0 0.0
    %603 = vmatpush.msra.mxu0 %v585
    %604 = vmatpush.msra.mxu0 %v584
    %605 = vmatpush.msra.mxu0 %v583
    %606 = vmatpush.msra.mxu0 %v582
    %607 = vmatpush.msra.mxu0 %v581
    %608 = vmatpush.msra.mxu0 %v580
    %609 = vmatpush.msra.mxu0 %v579
    %610 = vmatpush.msra.mxu0 %v578
    %611 = vmatmul.f32.gmra.mxu0 %v590
    %v612 = vpop.f32.mrf.mxu0
    %v613 = vadd.f32 %v587, %v612
    %614 = vmatmul.f32.gmra.mxu0 %v593
    %v615 = vpop.f32.mrf.mxu0
    %v616 = vadd.f32 %v587, %v615
    %617 = vdwg.mxu0
    %v618 = vadd.f32 %v539, %v613
    %v619 = vadd.f32 %v540, %v616
    %v620 = vld [vmem:[#allocation2 + $0xf8] sm:$0x1]
    %v621 = vld [vmem:[#allocation2 + $0x100] sm:$0x1]
    %v622 = vsel %vm69, %v618, 0.0
    %623 = vadd.xlane.f32.xlu0 %v622
    %v624 = vpop.xlane.xlu0 %623
    %v625 = vsel %vm69, %v619, 0.0
    %626 = vadd.xlane.f32.xlu0 %v625
    %v627 = vpop.xlane.xlu0 %626
    %v628 = vmul.f32 %v624, %v496
    %v629 = vmul.f32 %v627, %v496
    %v630 = vsub.f32 %v618, %v628
    %v631 = vsub.f32 %v619, %v629
    %v632 = vmul.f32 %v630, %v630
    %v633 = vmul.f32 %v631, %v631
    %v634 = vsel %vm69, %v632, 0.0
    %635 = vadd.xlane.f32.xlu0 %v634
    %v636 = vpop.xlane.xlu0 %635
    %v637 = vsel %vm69, %v633, 0.0
    %638 = vadd.xlane.f32.xlu0 %v637
    %v639 = vpop.xlane.xlu0 %638
    %v640 = vmul.f32 %v636, %v496
    %v641 = vmul.f32 %v639, %v496
    %v642 = vadd.f32 %v640, 1e-05
    %v643 = vadd.f32 %v641, 1e-05
    %v644 = vrsqrt.pop %v642
    %v645 = vmul.f32 %v644, %v642
    %v646 = vmul.f32 %v645, %v644
    %v647 = vmul.f32 0.5, %v646
    %v648 = vsub.f32 1.5, %v647
    %v649 = vmul.f32 %v644, %v648
    %vm650 = vweird.f32 %v642
    %vm651 = vweird.f32 %v644
    %vm652 = vmor %vm650, %vm651
    %v653 = vsel %vm652, %v644, %v649
    %v654 = vrsqrt.pop %v643
    %v655 = vmul.f32 %v654, %v643
    %v656 = vmul.f32 %v655, %v654
    %v657 = vmul.f32 0.5, %v656
    %v658 = vsub.f32 1.5, %v657
    %v659 = vmul.f32 %v654, %v658
    %vm660 = vweird.f32 %v643
    %vm661 = vweird.f32 %v654
    %vm662 = vmor %vm660, %vm661
    %v663 = vsel %vm662, %v654, %v659
    %v664 = vmul.f32 %v630, %v653
    %v665 = vmul.f32 %v631, %v663
    %v666 = vperm.slane %v620, 0
    %v667 = vmul.f32 %v664, %v666
    %v668 = vmul.f32 %v665, %v666
    %v669 = vperm.slane %v621, 0
    %v670 = vadd.f32 %v667, %v669
    %v671 = vadd.f32 %v668, %v669
    %v672 = vld [vmem:[#allocation2 + $0x108] sm:$0xff]
    %v673 = vld [vmem:[#allocation2 + $0x110] sm:$0xff]
    %v674 = vld [vmem:[#allocation2 + $0x118] sm:$0xff]
    %v675 = vld [vmem:[#allocation2 + $0x120] sm:$0xff]
    %v676 = vld [vmem:[#allocation2 + $0x128] sm:$0x1]
    %v677 = vperm.slane %v676, 0
    %v679 = vsel %vm69, %v670, 0
    %v682 = vsel %vm69, %v671, 0
    %684 = vmatpush.msra.mxu0 0.0
    %685 = vmatpush.msra.mxu0 0.0
    %686 = vmatpush.msra.mxu0 0.0
    %687 = vmatpush.msra.mxu0 0.0
    %688 = vmatpush.msra.mxu0 0.0
    %689 = vmatpush.msra.mxu0 0.0
    %690 = vmatpush.msra.mxu0 0.0
    %691 = vmatpush.msra.mxu0 0.0
    %692 = vmatpush.msra.mxu0 0.0
    %693 = vmatpush.msra.mxu0 0.0
    %694 = vmatpush.msra.mxu0 0.0
    %695 = vmatpush.msra.mxu0 0.0
    %696 = vmatpush.msra.mxu0 %v675
    %697 = vmatpush.msra.mxu0 %v674
    %698 = vmatpush.msra.mxu0 %v673
    %699 = vmatpush.msra.mxu0 %v672
    %700 = vmatmul.f32.gmra.mxu0 %v679
    %v701 = vpop.f32.mrf.mxu0
    %v702 = vadd.f32 %v677, %v701
    %703 = vmatmul.f32.gmra.mxu0 %v682
    %v704 = vpop.f32.mrf.mxu0
    %v705 = vadd.f32 %v677, %v704
    %706 = vdwg.mxu0
    %708 = vrot.lane.b32.xlu0 %v702, 96
    %v709 = vpop.permute.xlu0 %708
    %v710 = vsel %vm33, %v702, 0
    %v712 = vsel %vm33, %v709, 0
    %714 = vmatpush.xpose.msra.mxu0 0.0
    %715 = vmatpush.xpose.msra.mxu0 0.0
    %716 = vmatpush.xpose.msra.mxu0 0.0
    %717 = vmatpush.xpose.msra.mxu0 0.0
    %718 = vmatpush.xpose.msra.mxu0 0.0
    %719 = vmatpush.xpose.msra.mxu0 0.0
    %720 = vmatpush.xpose.msra.mxu0 0.0
    %721 = vmatpush.xpose.msra.mxu0 0.0
    %722 = vmatpush.xpose.msra.mxu0 0.0
    %723 = vmatpush.xpose.msra.mxu0 0.0
    %724 = vmatpush.xpose.msra.mxu0 0.0
    %725 = vmatpush.xpose.msra.mxu0 0.0
    %726 = vmatpush.xpose.msra.mxu0 0.0
    %727 = vmatpush.xpose.msra.mxu0 0.0
    %728 = vmatpush.xpose.msra.mxu0 0.0
    %729 = vmatpush.xpose.msra.mxu0 %v712
    %730 = vmatmul.f32.gmra.mxu0 %v710
    %v731 = vpop.f32.mrf.mxu0
    %v732 = vadd.f32 0.0, %v731
    %733 = vdwg.mxu0
    %v734 = vmul.f32 %v732, 0.25
    %v735 = vsel %vm127, %v734, -inf
    %736 = vmax.xlane.f32.xlu0 %v735
    %v737 = vpop.xlane.xlu0 %736
    %v738 = vsub.f32 %v734, %v737
    %v739 = vmul.f32 %v738, 1.442695
    %v740 = vpow.pop %v739
    %v741 = vsel %vm127, %v740, 0.0
    %742 = vadd.xlane.f32.xlu0 %v741
    %v743 = vpop.xlane.xlu0 %742
    %v744 = vrcp.pop %v743
    %v745 = vmul.f32 %v743, %v744
    %v746 = vsub.f32 1.0, %v745
    %v747 = vmul.f32 %v744, %v746
    %v748 = vadd.f32 %v744, %v747
    %vm749 = vweird.f32 %v743
    %vm750 = vweird.f32 %v744
    %vm751 = vmor %vm749, %vm750
    %v752 = vsel %vm751, %v744, %v748
    %v753 = vand.u32 2147483647, %v743
    %vm754 = vcmp.eq.f32.partialorder %v753, 8.507059e+37
    %v755 = vand.u32 %v743, 2147483648
    %v756 = vor.u32 1.1754944e-38, %v755
    %v757 = vsel %vm754, %v756, %v752
    %v758 = vmul.f32 %v740, %v757
    %759 = vrot.lane.b32.xlu0 %v702, 64
    %v760 = vpop.permute.xlu0 %759
    %v763 = vsel %vm127, %v758, 0
    %765 = vmatpush.msra.mxu0 0.0
    %766 = vmatpush.msra.mxu0 0.0
    %767 = vmatpush.msra.mxu0 0.0
    %768 = vmatpush.msra.mxu0 0.0
    %769 = vmatpush.msra.mxu0 0.0
    %770 = vmatpush.msra.mxu0 0.0
    %771 = vmatpush.msra.mxu0 0.0
    %772 = vmatpush.msra.mxu0 0.0
    %773 = vmatpush.msra.mxu0 0.0
    %774 = vmatpush.msra.mxu0 0.0
    %775 = vmatpush.msra.mxu0 0.0
    %776 = vmatpush.msra.mxu0 0.0
    %777 = vmatpush.msra.mxu0 0.0
    %778 = vmatpush.msra.mxu0 0.0
    %779 = vmatpush.msra.mxu0 0.0
    %780 = vmatpush.msra.mxu0 %v760
    %781 = vmatmul.f32.gmra.mxu0 %v763
    %v782 = vpop.f32.mrf.mxu0
    %v783 = vadd.f32 0.0, %v782
    %784 = vdwg.mxu0
    %786 = vrot.lane.b32.xlu0 %v705, 96
    %v787 = vpop.permute.xlu0 %786
    %v788 = vsel %vm33, %v705, 0
    %v790 = vsel %vm33, %v787, 0
    %792 = vmatpush.xpose.msra.mxu0 0.0
    %793 = vmatpush.xpose.msra.mxu0 0.0
    %794 = vmatpush.xpose.msra.mxu0 0.0
    %795 = vmatpush.xpose.msra.mxu0 0.0
    %796 = vmatpush.xpose.msra.mxu0 0.0
    %797 = vmatpush.xpose.msra.mxu0 0.0
    %798 = vmatpush.xpose.msra.mxu0 0.0
    %799 = vmatpush.xpose.msra.mxu0 0.0
    %800 = vmatpush.xpose.msra.mxu0 0.0
    %801 = vmatpush.xpose.msra.mxu0 0.0
    %802 = vmatpush.xpose.msra.mxu0 0.0
    %803 = vmatpush.xpose.msra.mxu0 0.0
    %804 = vmatpush.xpose.msra.mxu0 0.0
    %805 = vmatpush.xpose.msra.mxu0 0.0
    %806 = vmatpush.xpose.msra.mxu0 0.0
    %807 = vmatpush.xpose.msra.mxu0 %v790
    %808 = vmatmul.f32.gmra.mxu0 %v788
    %v809 = vpop.f32.mrf.mxu0
    %v810 = vadd.f32 0.0, %v809
    %811 = vdwg.mxu0
    %v812 = vmul.f32 %v810, 0.25
    %v813 = vsel %vm127, %v812, -inf
    %814 = vmax.xlane.f32.xlu0 %v813
    %v815 = vpop.xlane.xlu0 %814
    %v816 = vsub.f32 %v812, %v815
    %v817 = vmul.f32 %v816, 1.442695
    %v818 = vpow.pop %v817
    %v819 = vsel %vm127, %v818, 0.0
    %820 = vadd.xlane.f32.xlu0 %v819
    %v821 = vpop.xlane.xlu0 %820
    %v822 = vrcp.pop %v821
    %v823 = vmul.f32 %v821, %v822
    %v824 = vsub.f32 1.0, %v823
    %v825 = vmul.f32 %v822, %v824
    %v826 = vadd.f32 %v822, %v825
    %vm827 = vweird.f32 %v821
    %vm828 = vweird.f32 %v822
    %vm829 = vmor %vm827, %vm828
    %v830 = vsel %vm829, %v822, %v826
    %v831 = vand.u32 2147483647, %v821
    %vm832 = vcmp.eq.f32.partialorder %v831, 8.507059e+37
    %v833 = vand.u32 %v821, 2147483648
    %v834 = vor.u32 1.1754944e-38, %v833
    %v835 = vsel %vm832, %v834, %v830
    %v836 = vmul.f32 %v818, %v835
    %837 = vrot.lane.b32.xlu0 %v705, 64
    %v838 = vpop.permute.xlu0 %837
    %v841 = vsel %vm127, %v836, 0
    %843 = vmatpush.msra.mxu0 0.0
    %844 = vmatpush.msra.mxu0 0.0
    %845 = vmatpush.msra.mxu0 0.0
    %846 = vmatpush.msra.mxu0 0.0
    %847 = vmatpush.msra.mxu0 0.0
    %848 = vmatpush.msra.mxu0 0.0
    %849 = vmatpush.msra.mxu0 0.0
    %850 = vmatpush.msra.mxu0 0.0
    %851 = vmatpush.msra.mxu0 0.0
    %852 = vmatpush.msra.mxu0 0.0
    %853 = vmatpush.msra.mxu0 0.0
    %854 = vmatpush.msra.mxu0 0.0
    %855 = vmatpush.msra.mxu0 0.0
    %856 = vmatpush.msra.mxu0 0.0
    %857 = vmatpush.msra.mxu0 0.0
    %858 = vmatpush.msra.mxu0 %v838
    %859 = vmatmul.f32.gmra.mxu0 %v841
    %v860 = vpop.f32.mrf.mxu0
    %v861 = vadd.f32 0.0, %v860
    %862 = vdwg.mxu0
    %v863 = vld [vmem:[#allocation2 + $0x130] sm:$0xff]
    %v864 = vld [vmem:[#allocation2 + $0x138] sm:$0xff]
    %865 = vrot.lane.b32.xlu0 %v702, 112
    %v866 = vpop.permute.xlu0 %865
    %867 = vrot.lane.b32.xlu0 %v702, 80
    %v868 = vpop.permute.xlu0 %867
    %v869 = vsel %vm33, %v866, 0
    %v871 = vsel %vm33, %v868, 0
    %873 = vmatpush.xpose.msra.mxu0 0.0
    %874 = vmatpush.xpose.msra.mxu0 0.0
    %875 = vmatpush.xpose.msra.mxu0 0.0
    %876 = vmatpush.xpose.msra.mxu0 0.0
    %877 = vmatpush.xpose.msra.mxu0 0.0
    %878 = vmatpush.xpose.msra.mxu0 0.0
    %879 = vmatpush.xpose.msra.mxu0 0.0
    %880 = vmatpush.xpose.msra.mxu0 0.0
    %881 = vmatpush.xpose.msra.mxu0 0.0
    %882 = vmatpush.xpose.msra.mxu0 0.0
    %883 = vmatpush.xpose.msra.mxu0 0.0
    %884 = vmatpush.xpose.msra.mxu0 0.0
    %885 = vmatpush.xpose.msra.mxu0 0.0
    %886 = vmatpush.xpose.msra.mxu0 0.0
    %887 = vmatpush.xpose.msra.mxu0 0.0
    %888 = vmatpush.xpose.msra.mxu0 %v871
    %889 = vmatmul.f32.gmra.mxu0 %v869
    %v890 = vpop.f32.mrf.mxu0
    %v891 = vadd.f32 0.0, %v890
    %892 = vdwg.mxu0
    %v893 = vmul.f32 %v891, 0.25
    %v894 = vsel %vm127, %v893, -inf
    %895 = vmax.xlane.f32.xlu0 %v894
    %v896 = vpop.xlane.xlu0 %895
    %v897 = vsub.f32 %v893, %v896
    %v898 = vmul.f32 %v897, 1.442695
    %v899 = vpow.pop %v898
    %v900 = vsel %vm127, %v899, 0.0
    %901 = vadd.xlane.f32.xlu0 %v900
    %v902 = vpop.xlane.xlu0 %901
    %v903 = vrcp.pop %v902
    %v904 = vmul.f32 %v902, %v903
    %v905 = vsub.f32 1.0, %v904
    %v906 = vmul.f32 %v903, %v905
    %v907 = vadd.f32 %v903, %v906
    %vm908 = vweird.f32 %v902
    %vm909 = vweird.f32 %v903
    %vm910 = vmor %vm908, %vm909
    %v911 = vsel %vm910, %v903, %v907
    %v912 = vand.u32 2147483647, %v902
    %vm913 = vcmp.eq.f32.partialorder %v912, 8.507059e+37
    %v914 = vand.u32 %v902, 2147483648
    %v915 = vor.u32 1.1754944e-38, %v914
    %v916 = vsel %vm913, %v915, %v911
    %v917 = vmul.f32 %v899, %v916
    %918 = vrot.lane.b32.xlu0 %v702, 48
    %v919 = vpop.permute.xlu0 %918
    %v922 = vsel %vm127, %v917, 0
    %924 = vmatpush.msra.mxu0 0.0
    %925 = vmatpush.msra.mxu0 0.0
    %926 = vmatpush.msra.mxu0 0.0
    %927 = vmatpush.msra.mxu0 0.0
    %928 = vmatpush.msra.mxu0 0.0
    %929 = vmatpush.msra.mxu0 0.0
    %930 = vmatpush.msra.mxu0 0.0
    %931 = vmatpush.msra.mxu0 0.0
    %932 = vmatpush.msra.mxu0 0.0
    %933 = vmatpush.msra.mxu0 0.0
    %934 = vmatpush.msra.mxu0 0.0
    %935 = vmatpush.msra.mxu0 0.0
    %936 = vmatpush.msra.mxu0 0.0
    %937 = vmatpush.msra.mxu0 0.0
    %938 = vmatpush.msra.mxu0 0.0
    %939 = vmatpush.msra.mxu0 %v919
    %940 = vmatmul.f32.gmra.mxu0 %v922
    %v941 = vpop.f32.mrf.mxu0
    %v942 = vadd.f32 0.0, %v941
    %943 = vdwg.mxu0
    %944 = vrot.lane.b32.xlu0 %v705, 112
    %v945 = vpop.permute.xlu0 %944
    %946 = vrot.lane.b32.xlu0 %v705, 80
    %v947 = vpop.permute.xlu0 %946
    %v948 = vsel %vm33, %v945, 0
    %v950 = vsel %vm33, %v947, 0
    %952 = vmatpush.xpose.msra.mxu0 0.0
    %953 = vmatpush.xpose.msra.mxu0 0.0
    %954 = vmatpush.xpose.msra.mxu0 0.0
    %955 = vmatpush.xpose.msra.mxu0 0.0
    %956 = vmatpush.xpose.msra.mxu0 0.0
    %957 = vmatpush.xpose.msra.mxu0 0.0
    %958 = vmatpush.xpose.msra.mxu0 0.0
    %959 = vmatpush.xpose.msra.mxu0 0.0
    %960 = vmatpush.xpose.msra.mxu0 0.0
    %961 = vmatpush.xpose.msra.mxu0 0.0
    %962 = vmatpush.xpose.msra.mxu0 0.0
    %963 = vmatpush.xpose.msra.mxu0 0.0
    %964 = vmatpush.xpose.msra.mxu0 0.0
    %965 = vmatpush.xpose.msra.mxu0 0.0
    %966 = vmatpush.xpose.msra.mxu0 0.0
    %967 = vmatpush.xpose.msra.mxu0 %v950
    %968 = vmatmul.f32.gmra.mxu0 %v948
    %v969 = vpop.f32.mrf.mxu0
    %v970 = vadd.f32 0.0, %v969
    %971 = vdwg.mxu0
    %v972 = vmul.f32 %v970, 0.25
    %v973 = vsel %vm127, %v972, -inf
    %974 = vmax.xlane.f32.xlu0 %v973
    %v975 = vpop.xlane.xlu0 %974
    %v976 = vsub.f32 %v972, %v975
    %v977 = vmul.f32 %v976, 1.442695
    %v978 = vpow.pop %v977
    %v979 = vsel %vm127, %v978, 0.0
    %980 = vadd.xlane.f32.xlu0 %v979
    %v981 = vpop.xlane.xlu0 %980
    %v982 = vrcp.pop %v981
    %v983 = vmul.f32 %v981, %v982
    %v984 = vsub.f32 1.0, %v983
    %v985 = vmul.f32 %v982, %v984
    %v986 = vadd.f32 %v982, %v985
    %vm987 = vweird.f32 %v981
    %vm988 = vweird.f32 %v982
    %vm989 = vmor %vm987, %vm988
    %v990 = vsel %vm989, %v982, %v986
    %v991 = vand.u32 2147483647, %v981
    %vm992 = vcmp.eq.f32.partialorder %v991, 8.507059e+37
    %v993 = vand.u32 %v981, 2147483648
    %v994 = vor.u32 1.1754944e-38, %v993
    %v995 = vsel %vm992, %v994, %v990
    %v996 = vmul.f32 %v978, %v995
    %997 = vrot.lane.b32.xlu0 %v705, 48
    %v998 = vpop.permute.xlu0 %997
    %v1001 = vsel %vm127, %v996, 0
    %1003 = vmatpush.msra.mxu0 0.0
    %1004 = vmatpush.msra.mxu0 0.0
    %1005 = vmatpush.msra.mxu0 0.0
    %1006 = vmatpush.msra.mxu0 0.0
    %1007 = vmatpush.msra.mxu0 0.0
    %1008 = vmatpush.msra.mxu0 0.0
    %1009 = vmatpush.msra.mxu0 0.0
    %1010 = vmatpush.msra.mxu0 0.0
    %1011 = vmatpush.msra.mxu0 0.0
    %1012 = vmatpush.msra.mxu0 0.0
    %1013 = vmatpush.msra.mxu0 0.0
    %1014 = vmatpush.msra.mxu0 0.0
    %1015 = vmatpush.msra.mxu0 0.0
    %1016 = vmatpush.msra.mxu0 0.0
    %1017 = vmatpush.msra.mxu0 0.0
    %1018 = vmatpush.msra.mxu0 %v998
    %1019 = vmatmul.f32.gmra.mxu0 %v1001
    %v1020 = vpop.f32.mrf.mxu0
    %v1021 = vadd.f32 0.0, %v1020
    %1022 = vdwg.mxu0
    %v1023 = vld [vmem:[#allocation2 + $0x140] sm:$0xff]
    %v1024 = vld [vmem:[#allocation2 + $0x148] sm:$0xff]
    %v1026 = vsel %vm33, %v942, 0
    %v1029 = vsel %vm33, %v1021, 0
    %1031 = vmatpush.msra.mxu0 0.0
    %1032 = vmatpush.msra.mxu0 0.0
    %1033 = vmatpush.msra.mxu0 0.0
    %1034 = vmatpush.msra.mxu0 0.0
    %1035 = vmatpush.msra.mxu0 0.0
    %1036 = vmatpush.msra.mxu0 0.0
    %1037 = vmatpush.msra.mxu0 0.0
    %1038 = vmatpush.msra.mxu0 0.0
    %1039 = vmatpush.msra.mxu0 0.0
    %1040 = vmatpush.msra.mxu0 0.0
    %1041 = vmatpush.msra.mxu0 0.0
    %1042 = vmatpush.msra.mxu0 0.0
    %1043 = vmatpush.msra.mxu0 0.0
    %1044 = vmatpush.msra.mxu0 0.0
    %1045 = vmatpush.msra.mxu0 %v1024
    %1046 = vmatpush.msra.mxu0 %v1023
    %1047 = vmatmul.f32.gmra.mxu0 %v1026
    %v1048 = vpop.f32.mrf.mxu0
    %v1049 = vadd.f32 0.0, %v1048
    %1050 = vmatmul.f32.gmra.mxu0 %v1029
    %v1051 = vpop.f32.mrf.mxu0
    %v1052 = vadd.f32 0.0, %v1051
    %1053 = vdwg.mxu0
    %v1055 = vsel %vm33, %v783, 0
    %v1058 = vsel %vm33, %v861, 0
    %1060 = vmatpush.msra.mxu0 0.0
    %1061 = vmatpush.msra.mxu0 0.0
    %1062 = vmatpush.msra.mxu0 0.0
    %1063 = vmatpush.msra.mxu0 0.0
    %1064 = vmatpush.msra.mxu0 0.0
    %1065 = vmatpush.msra.mxu0 0.0
    %1066 = vmatpush.msra.mxu0 0.0
    %1067 = vmatpush.msra.mxu0 0.0
    %1068 = vmatpush.msra.mxu0 0.0
    %1069 = vmatpush.msra.mxu0 0.0
    %1070 = vmatpush.msra.mxu0 0.0
    %1071 = vmatpush.msra.mxu0 0.0
    %1072 = vmatpush.msra.mxu0 0.0
    %1073 = vmatpush.msra.mxu0 0.0
    %1074 = vmatpush.msra.mxu0 %v864
    %1075 = vmatpush.msra.mxu0 %v863
    %1076 = vmatmul.f32.gmra.mxu0 %v1055
    %v1077 = vpop.f32.mrf.mxu0
    %v1078 = vadd.f32 %v1049, %v1077
    %1079 = vmatmul.f32.gmra.mxu0 %v1058
    %v1080 = vpop.f32.mrf.mxu0
    %v1081 = vadd.f32 %v1052, %v1080
    %1082 = vdwg.mxu0
    %v1083 = vld [vmem:[#allocation2 + $0x150] sm:$0x1]
    %v1084 = vperm.slane %v1083, 0
    %v1085 = vadd.f32 %v1078, %v1084
    %v1086 = vadd.f32 %v1081, %v1084
    %v1087 = vadd.f32 %v670, %v1085
    %v1088 = vadd.f32 %v671, %v1086
    %v1089 = vld [vmem:[#allocation2 + $0x158] sm:$0x1]
    %v1090 = vld [vmem:[#allocation2 + $0x160] sm:$0x1]
    %v1091 = vsel %vm69, %v1087, 0.0
    %1092 = vadd.xlane.f32.xlu0 %v1091
    %v1093 = vpop.xlane.xlu0 %1092
    %v1094 = vsel %vm69, %v1088, 0.0
    %1095 = vadd.xlane.f32.xlu0 %v1094
    %v1096 = vpop.xlane.xlu0 %1095
    %v1097 = vmul.f32 %v1093, %v496
    %v1098 = vmul.f32 %v1096, %v496
    %v1099 = vsub.f32 %v1087, %v1097
    %v1100 = vsub.f32 %v1088, %v1098
    %v1101 = vmul.f32 %v1099, %v1099
    %v1102 = vmul.f32 %v1100, %v1100
    %v1103 = vsel %vm69, %v1101, 0.0
    %1104 = vadd.xlane.f32.xlu0 %v1103
    %v1105 = vpop.xlane.xlu0 %1104
    %v1106 = vsel %vm69, %v1102, 0.0
    %1107 = vadd.xlane.f32.xlu0 %v1106
    %v1108 = vpop.xlane.xlu0 %1107
    %v1109 = vmul.f32 %v1105, %v496
    %v1110 = vmul.f32 %v1108, %v496
    %v1111 = vadd.f32 %v1109, 1e-05
    %v1112 = vadd.f32 %v1110, 1e-05
    %v1113 = vrsqrt.pop %v1111
    %v1114 = vmul.f32 %v1113, %v1111
    %v1115 = vmul.f32 %v1114, %v1113
    %v1116 = vmul.f32 0.5, %v1115
    %v1117 = vsub.f32 1.5, %v1116
    %v1118 = vmul.f32 %v1113, %v1117
    %vm1119 = vweird.f32 %v1111
    %vm1120 = vweird.f32 %v1113
    %vm1121 = vmor %vm1119, %vm1120
    %v1122 = vsel %vm1121, %v1113, %v1118
    %v1123 = vrsqrt.pop %v1112
    %v1124 = vmul.f32 %v1123, %v1112
    %v1125 = vmul.f32 %v1124, %v1123
    %v1126 = vmul.f32 0.5, %v1125
    %v1127 = vsub.f32 1.5, %v1126
    %v1128 = vmul.f32 %v1123, %v1127
    %vm1129 = vweird.f32 %v1112
    %vm1130 = vweird.f32 %v1123
    %vm1131 = vmor %vm1129, %vm1130
    %v1132 = vsel %vm1131, %v1123, %v1128
    %v1133 = vmul.f32 %v1099, %v1122
    %v1134 = vmul.f32 %v1100, %v1132
    %v1135 = vperm.slane %v1089, 0
    %v1136 = vmul.f32 %v1133, %v1135
    %v1137 = vmul.f32 %v1134, %v1135
    %v1138 = vperm.slane %v1090, 0
    %v1139 = vadd.f32 %v1136, %v1138
    %v1140 = vadd.f32 %v1137, %v1138
    %v1141 = vld [vmem:[#allocation2 + $0x168] sm:$0xff]
    %v1142 = vld [vmem:[#allocation2 + $0x170] sm:$0xff]
    %v1143 = vld [vmem:[#allocation2 + $0x178] sm:$0xff]
    %v1144 = vld [vmem:[#allocation2 + $0x180] sm:$0xff]
    %v1145 = vld [vmem:[#allocation2 + $0x188] sm:$0x1]
    %v1146 = vperm.slane %v1145, 0
    %v1148 = vsel %vm69, %v1139, 0
    %v1151 = vsel %vm69, %v1140, 0
    %1153 = vmatpush.msra.mxu0 0.0
    %1154 = vmatpush.msra.mxu0 0.0
    %1155 = vmatpush.msra.mxu0 0.0
    %1156 = vmatpush.msra.mxu0 0.0
    %1157 = vmatpush.msra.mxu0 0.0
    %1158 = vmatpush.msra.mxu0 0.0
    %1159 = vmatpush.msra.mxu0 0.0
    %1160 = vmatpush.msra.mxu0 0.0
    %1161 = vmatpush.msra.mxu0 0.0
    %1162 = vmatpush.msra.mxu0 0.0
    %1163 = vmatpush.msra.mxu0 0.0
    %1164 = vmatpush.msra.mxu0 0.0
    %1165 = vmatpush.msra.mxu0 %v1144
    %1166 = vmatpush.msra.mxu0 %v1143
    %1167 = vmatpush.msra.mxu0 %v1142
    %1168 = vmatpush.msra.mxu0 %v1141
    %1169 = vmatmul.f32.gmra.mxu0 %v1148
    %v1170 = vpop.f32.mrf.mxu0
    %v1171 = vadd.f32 %v1146, %v1170
    %1172 = vmatmul.f32.gmra.mxu0 %v1151
    %v1173 = vpop.f32.mrf.mxu0
    %v1174 = vadd.f32 %v1146, %v1173
    %1175 = vdwg.mxu0
    %v1176 = vmax.f32 %v1171, 0.0
    %v1177 = vmax.f32 %v1174, 0.0
    %v1178 = vld [vmem:[#allocation2 + $0x190] sm:$0xff]
    %v1179 = vld [vmem:[#allocation2 + $0x198] sm:$0xff]
    %v1180 = vld [vmem:[#allocation2 + $0x1a0] sm:$0xff]
    %v1181 = vld [vmem:[#allocation2 + $0x1a8] sm:$0xff]
    %v1182 = vld [vmem:[#allocation2 + $0x1b0] sm:$0xff]
    %v1183 = vld [vmem:[#allocation2 + $0x1b8] sm:$0xff]
    %v1184 = vld [vmem:[#allocation2 + $0x1c0] sm:$0xff]
    %v1185 = vld [vmem:[#allocation2 + $0x1c8] sm:$0xff]
    %v1186 = vld [vmem:[#allocation2 + $0x1d0] sm:$0x1]
    %v1187 = vperm.slane %v1186, 0
    %v1189 = vsel %vm588, %v1176, 0
    %v1192 = vsel %vm588, %v1177, 0
    %1194 = vmatpush.msra.mxu0 0.0
    %1195 = vmatpush.msra.mxu0 0.0
    %1196 = vmatpush.msra.mxu0 0.0
    %1197 = vmatpush.msra.mxu0 0.0
    %1198 = vmatpush.msra.mxu0 0.0
    %1199 = vmatpush.msra.mxu0 0.0
    %1200 = vmatpush.msra.mxu0 0.0
    %1201 = vmatpush.msra.mxu0 0.0
    %1202 = vmatpush.msra.mxu0 %v1185
    %1203 = vmatpush.msra.mxu0 %v1184
    %1204 = vmatpush.msra.mxu0 %v1183
    %1205 = vmatpush.msra.mxu0 %v1182
    %1206 = vmatpush.msra.mxu0 %v1181
    %1207 = vmatpush.msra.mxu0 %v1180
    %1208 = vmatpush.msra.mxu0 %v1179
    %1209 = vmatpush.msra.mxu0 %v1178
    %1210 = vmatmul.f32.gmra.mxu0 %v1189
    %v1211 = vpop.f32.mrf.mxu0
    %v1212 = vadd.f32 %v1187, %v1211
    %1213 = vmatmul.f32.gmra.mxu0 %v1192
    %v1214 = vpop.f32.mrf.mxu0
    %v1215 = vadd.f32 %v1187, %v1214
    %1216 = vdwg.mxu0
    %v1217 = vadd.f32 %v1139, %v1212
    %v1218 = vadd.f32 %v1140, %v1215
    %v1219 = vld [vmem:[#allocation2 + $0x1d8] sm:$0x1]
    %v1220 = vld [vmem:[#allocation2 + $0x1e0] sm:$0x1]
    %v1221 = vsel %vm69, %v1217, 0.0
    %1222 = vadd.xlane.f32.xlu0 %v1221
    %v1223 = vpop.xlane.xlu0 %1222
    %v1224 = vsel %vm69, %v1218, 0.0
    %1225 = vadd.xlane.f32.xlu0 %v1224
    %v1226 = vpop.xlane.xlu0 %1225
    %v1227 = vmul.f32 %v1223, %v496
    %v1228 = vmul.f32 %v1226, %v496
    %v1229 = vsub.f32 %v1217, %v1227
    %v1230 = vsub.f32 %v1218, %v1228
    %v1231 = vmul.f32 %v1229, %v1229
    %v1232 = vmul.f32 %v1230, %v1230
    %v1233 = vsel %vm69, %v1231, 0.0
    %1234 = vadd.xlane.f32.xlu0 %v1233
    %v1235 = vpop.xlane.xlu0 %1234
    %v1236 = vsel %vm69, %v1232, 0.0
    %1237 = vadd.xlane.f32.xlu0 %v1236
    %v1238 = vpop.xlane.xlu0 %1237
    %v1239 = vmul.f32 %v1235, %v496
    %v1240 = vmul.f32 %v1238, %v496
    %v1241 = vadd.f32 %v1239, 1e-05
    %v1242 = vadd.f32 %v1240, 1e-05
    %v1243 = vrsqrt.pop %v1241
    %v1244 = vmul.f32 %v1243, %v1241
    %v1245 = vmul.f32 %v1244, %v1243
    %v1246 = vmul.f32 0.5, %v1245
    %v1247 = vsub.f32 1.5, %v1246
    %v1248 = vmul.f32 %v1243, %v1247
    %vm1249 = vweird.f32 %v1241
    %vm1250 = vweird.f32 %v1243
    %vm1251 = vmor %vm1249, %vm1250
    %v1252 = vsel %vm1251, %v1243, %v1248
    %v1253 = vrsqrt.pop %v1242
    %v1254 = vmul.f32 %v1253, %v1242
    %v1255 = vmul.f32 %v1254, %v1253
    %v1256 = vmul.f32 0.5, %v1255
    %v1257 = vsub.f32 1.5, %v1256
    %v1258 = vmul.f32 %v1253, %v1257
    %vm1259 = vweird.f32 %v1242
    %vm1260 = vweird.f32 %v1253
    %vm1261 = vmor %vm1259, %vm1260
    %v1262 = vsel %vm1261, %v1253, %v1258
    %v1263 = vmul.f32 %v1229, %v1252
    %v1264 = vmul.f32 %v1230, %v1262
    %v1265 = vperm.slane %v1219, 0
    %v1266 = vmul.f32 %v1263, %v1265
    %v1267 = vmul.f32 %v1264, %v1265
    %v1268 = vperm.slane %v1220, 0
    %v1269 = vadd.f32 %v1266, %v1268
    %v1270 = vadd.f32 %v1267, %v1268
    %v1271 = vld [vmem:[#allocation2 + $0x18] sm:$0x1]
    %v1272 = vperm.slane %v1271, 0
    %v1273 = vmul.f32 %v1269, %v1272
    %v1274 = vmul.f32 %v1270, %v1272
    %v1275 = vsel %vm69, %v1273, 0.0
    %1276 = vadd.xlane.f32.xlu0 %v1275
    %v1277 = vpop.xlane.xlu0 %1276
    %v1278 = vsel %vm69, %v1274, 0.0
    %1279 = vadd.xlane.f32.xlu0 %v1278
    %v1280 = vpop.xlane.xlu0 %1279
    %v1281 = vld [vmem:[#allocation2 + $0x20] sm:$0x1]
    %v1282 = vperm.slane %v1281, 0
    %v1283 = vadd.f32 %v1277, %v1282
    %v1284 = vadd.f32 %v1280, %v1282
    %vm1285 = vcmask 7168
    %1286 = vst.msk [vmem:[%s2] sm:$0xff] %vm1285, %v1283
    %1287 = vst.msk [vmem:[%s2 + $0x8] sm:$0xff] %vm1285, %v1284
    // Predicated region
    $region14: #{simple_transformer_forward.1} parent=1 // pred_check
      _
    $region15: #{simple_transformer_forward.1} parent=1 // pred_check_branch
      %1289 = sbr.rel (0) target = $region17
    $region16: #{simple_transformer_forward.1} parent=1 // pred_region
      _
    $region17: #{simple_transformer_forward.1} parent=1 // pred_fallthru
      _
    // Predicated region
    $region18: #{simple_transformer_forward.1} parent=1 // pred_check
      _
    $region19: #{simple_transformer_forward.1} parent=1 // pred_check_branch
      %1291 = sbr.rel (0) target = $region21
    $region20: #{simple_transformer_forward.1} parent=1 // pred_region
      _
    $region21: #{simple_transformer_forward.1} parent=1 // pred_fallthru
      _
    %1292 = vsyncpa [#allocation3], 1

</llo_original>
